<compile_context>
chip_gen: v7x
topology: tpu7x:2x2x1
jax: 0.10.0
libtpu: 0.0.40
codegen_flags: <defaults>
</compile_context>

<pallas_src>
import jax
import jax.numpy as jnp
import numpy as np
from jax.experimental import pallas as pl
from jax.experimental.pallas import tpu as pltpu

# ---- problem sizes (small, but D is fixed at 768 by the module) ----
B = 2            # batch
T = 8            # max seq len
D = 768          # transformer_hidden_size (fixed in OscarEncoder.__init__)
H = 32           # hidden_size
DEC = 64         # decoder_hidden_size (!= H so encoder_lstm2decoder_ct is applied)
VOCAB = 100


def oscar_lstm_kernel(
    x_ref,        # (T*B, D)   time-major flattened BERT-stub embeddings
    mask_ref,     # (T, B, 1)  f32 validity mask (1.0 while t < length[b])
    wih_ref,      # (D, 4H)    W_ih^T
    whh_ref,      # (H, 4H)    W_hh^T
    b_ref,        # (1, 4H)    b_ih + b_hh
    wht_ref,      # (H, DEC)   encoder_lstm2decoder_ht weight^T
    bht_ref,      # (1, DEC)
    wct_ref,      # (H, DEC)   encoder_lstm2decoder_ct weight^T
    bct_ref,      # (1, DEC)
    ctx_ref,      # (T, B, H)  out: per-step hidden states (0 where padded)
    dec_init_ref, # (B, DEC)   out: tanh(Linear(h_T))
    ct_out_ref,   # (B, DEC)   out: Linear(c_T)
):
    T_, B_, H_ = ctx_ref.shape

    # Hoisted input projection: one batched (T*B, D) @ (D, 4H) MXU matmul
    # instead of T serialized (B, D) @ (D, 4H) matmuls on the critical path.
    pregates = (
        jnp.dot(x_ref[...], wih_ref[...], preferred_element_type=jnp.float32)
        + b_ref[...]
    )                                                   # (T*B, 4H)

    whh = whh_ref[...]                                  # (H, 4H), loaded once

    h = jnp.zeros((B_, H_), jnp.float32)
    c = jnp.zeros((B_, H_), jnp.float32)

    # Time recurrence, fully unrolled at trace time (T static & small).
    # h/c stay in registers; only the (B, H) ctx slab is stored per step.
    for t in range(T_):
        gates = pregates[t * B_:(t + 1) * B_, :] + jnp.dot(
            h, whh, preferred_element_type=jnp.float32)  # (B, 4H), order i,f,g,o
        i_g = jax.nn.sigmoid(gates[:, 0 * H_:1 * H_])
        f_g = jax.nn.sigmoid(gates[:, 1 * H_:2 * H_])
        g_g = jnp.tanh(gates[:, 2 * H_:3 * H_])
        o_g = jax.nn.sigmoid(gates[:, 3 * H_:4 * H_])

        c_new = f_g * c + i_g * g_g
        h_new = o_g * jnp.tanh(c_new)

        m = mask_ref[t]                 # (B, 1); 1.0 = valid, 0.0 = padding
        om = 1.0 - m
        h = m * h_new + om * h          # freeze state once t >= length[b]
        c = m * c_new + om * c
        ctx_ref[t] = m * h_new          # pad_packed_sequence: zeros past length

    # Final-state projections: computed exactly once (not per timestep).
    dec_init_ref[...] = jnp.tanh(
        jnp.dot(h, wht_ref[...], preferred_element_type=jnp.float32) + bht_ref[...]
    )
    ct_out_ref[...] = (
        jnp.dot(c, wct_ref[...], preferred_element_type=jnp.float32) + bct_ref[...]
    )


def lstm_encoder_pallas(x_2d, mask, wih_t, whh_t, b, wht_t, bht, wct_t, bct):
    """x_2d: (T*B, D) f32 time-major, mask: (T, B, 1) f32."""
    vmem = pl.BlockSpec(memory_space=pltpu.MemorySpace.VMEM)
    ctx_tbh, dec_init, c_t = pl.pallas_call(
        oscar_lstm_kernel,
        out_shape=(
            jax.ShapeDtypeStruct((T, B, H), jnp.float32),
            jax.ShapeDtypeStruct((B, DEC), jnp.float32),
            jax.ShapeDtypeStruct((B, DEC), jnp.float32),
        ),
        # Single invocation (no grid): total live data (<0.5 MiB) fits VMEM on
        # v5e/v6e/v7x; nothing to pipeline across time.
        in_specs=(vmem,) * 9,
        out_specs=(vmem, vmem, vmem),
    )(x_2d, mask, wih_t, whh_t, b, wht_t, bht, wct_t, bct)
    return ctx_tbh, dec_init, c_t


def init_params(key):
    ks = jax.random.split(key, 10)
    s = 0.05
    return dict(
        word_emb=jax.random.normal(ks[0], (VOCAB, D), jnp.float32) * s,
        pos_emb=jax.random.normal(ks[1], (T, D), jnp.float32) * s,
        w_ih=jax.random.normal(ks[2], (4 * H, D), jnp.float32) * s,   # PyTorch layout (4H, D)
        w_hh=jax.random.normal(ks[3], (4 * H, H), jnp.float32) * s,
        b_ih=jax.random.normal(ks[4], (4 * H,), jnp.float32) * s,
        b_hh=jax.random.normal(ks[5], (4 * H,), jnp.float32) * s,
        w_ht=jax.random.normal(ks[6], (DEC, H), jnp.float32) * s,     # encoder_lstm2decoder_ht
        b_ht=jax.random.normal(ks[7], (DEC,), jnp.float32) * s,
        w_ct=jax.random.normal(ks[8], (DEC, H), jnp.float32) * s,     # encoder_lstm2decoder_ct
        b_ct=jax.random.normal(ks[9], (DEC,), jnp.float32) * s,
    )


@jax.jit
def oscar_encoder_forward(params, inputs, lengths):
    """inputs: (B, T) int32 token ids; lengths: (B,) int32 (sorted descending).

    Returns (ctx, decoder_init, c_t) matching OscarEncoder.forward semantics
    (eval mode, reverse_input=False, unidirectional single-layer LSTM).
    """
    # --- BERT stub (glue, plain JAX): embedding lookup standing in for self.bert ---
    # TODO(synk): full BERT transformer stack is an external submodule; stubbed as
    # word + position embeddings producing the (B, T, 768) sequence output.
    bert_out = params["word_emb"][inputs] + params["pos_emb"][None, :, :]   # (B, T, D)

    # Time-major, flattened for the single batched input projection.
    x_2d = jnp.transpose(bert_out, (1, 0, 2)).reshape(T * B, D)             # (T*B, D)

    # Precomputed pack/pad mask (feedback: f32 mask instead of int compare+selects).
    mask = (jnp.arange(T, dtype=jnp.int32)[:, None] < lengths[None, :])
    mask = mask.astype(jnp.float32)[:, :, None]                             # (T, B, 1)

    wih_t = params["w_ih"].T                                                # (D, 4H)
    whh_t = params["w_hh"].T                                                # (H, 4H)
    bias = (params["b_ih"] + params["b_hh"]).reshape(1, 4 * H)
    wht_t = params["w_ht"].T                                                # (H, DEC)
    bht = params["b_ht"].reshape(1, DEC)
    wct_t = params["w_ct"].T
    bct = params["b_ct"].reshape(1, DEC)

    ctx_tbh, dec_init, c_t = lstm_encoder_pallas(
        x_2d, mask, wih_t, whh_t, bias, wht_t, bht, wct_t, bct
    )
    ctx = jnp.transpose(ctx_tbh, (1, 0, 2))                                 # (B, T, H)
    # self.drop(ctx): dropout is identity in eval mode.
    return ctx, dec_init, c_t


def reference_forward(params, inputs, lengths):
    """Pure-JAX reference (lax.scan LSTM) for correctness check."""
    bert_out = params["word_emb"][inputs] + params["pos_emb"][None, :, :]
    x_tbd = jnp.transpose(bert_out, (1, 0, 2))
    wih_t, whh_t = params["w_ih"].T, params["w_hh"].T
    bias = params["b_ih"] + params["b_hh"]

    def step(carry, inp):
        h, c = carry
        x_t, t = inp
        gates = x_t @ wih_t + h @ whh_t + bias
        i = jax.nn.sigmoid(gates[:, 0 * H:1 * H])
        f = jax.nn.sigmoid(gates[:, 1 * H:2 * H])
        g = jnp.tanh(gates[:, 2 * H:3 * H])
        o = jax.nn.sigmoid(gates[:, 3 * H:4 * H])
        c_new = f * c + i * g
        h_new = o * jnp.tanh(c_new)
        valid = (lengths > t)[:, None]
        h2 = jnp.where(valid, h_new, h)
        c2 = jnp.where(valid, c_new, c)
        return (h2, c2), jnp.where(valid, h_new, 0.0)

    (h_T, c_T), ctx_tbh = jax.lax.scan(
        step,
        (jnp.zeros((B, H), jnp.float32), jnp.zeros((B, H), jnp.float32)),
        (x_tbd, jnp.arange(T)),
    )
    ctx = jnp.transpose(ctx_tbh, (1, 0, 2))
    dec_init = jnp.tanh(h_T @ params["w_ht"].T + params["b_ht"])
    c_t = c_T @ params["w_ct"].T + params["b_ct"]
    return ctx, dec_init, c_t


if __name__ == "__main__":
    key = jax.random.PRNGKey(0)
    pkey, ikey = jax.random.split(key)
    params = init_params(pkey)

    inputs = jax.random.randint(ikey, (B, T), 0, VOCAB, dtype=jnp.int32)
    lengths = jnp.array([8, 5], dtype=jnp.int32)   # sorted descending, max == T

    ctx, dec_init, c_t = oscar_encoder_forward(params, inputs, lengths)
    jax.block_until_ready((ctx, dec_init, c_t))

    ctx_r, dec_r, ct_r = reference_forward(params, inputs, lengths)
    np.testing.assert_allclose(np.asarray(ctx), np.asarray(ctx_r), atol=1e-5, rtol=1e-5)
    np.testing.assert_allclose(np.asarray(dec_init), np.asarray(dec_r), atol=1e-5, rtol=1e-5)
    np.testing.assert_allclose(np.asarray(c_t), np.asarray(ct_r), atol=1e-5, rtol=1e-5)

    assert ctx.shape == (B, T, H) and dec_init.shape == (B, DEC) and c_t.shape == (B, DEC)
    print("KERNEL_OK")
</pallas_src>

<mosaic_0001>
module attributes {stable_mosaic.version = 11 : i64} {
  func.func @oscar_lstm_kernel(%arg0: memref<16x768xf32, #tpu.memory_space<vmem>>, %arg1: memref<8x2x1xf32, #tpu.memory_space<vmem>>, %arg2: memref<768x128xf32, #tpu.memory_space<vmem>>, %arg3: memref<32x128xf32, #tpu.memory_space<vmem>>, %arg4: memref<1x128xf32, #tpu.memory_space<vmem>>, %arg5: memref<32x64xf32, #tpu.memory_space<vmem>>, %arg6: memref<1x64xf32, #tpu.memory_space<vmem>>, %arg7: memref<32x64xf32, #tpu.memory_space<vmem>>, %arg8: memref<1x64xf32, #tpu.memory_space<vmem>>, %arg9: memref<8x2x32xf32, #tpu.memory_space<vmem>>, %arg10: memref<2x64xf32, #tpu.memory_space<vmem>>, %arg11: memref<2x64xf32, #tpu.memory_space<vmem>>) attributes {dimension_semantics = [], scalar_prefetch = 0 : i64, scratch_operands = 0 : i64, tpu.core_type = #tpu.core_type<tc>} {
    %c0 = arith.constant 0 : index
    %c0_0 = arith.constant 0 : index
    %0 = vector.load %arg0[%c0, %c0_0] : memref<16x768xf32, #tpu.memory_space<vmem>>, vector<16x768xf32>
    %c0_1 = arith.constant 0 : index
    %c0_2 = arith.constant 0 : index
    %1 = vector.load %arg2[%c0_1, %c0_2] : memref<768x128xf32, #tpu.memory_space<vmem>>, vector<768x128xf32>
    %cst = arith.constant dense<0.000000e+00> : vector<16x128xf32>
    %2 = tpu.matmul %0, %1, %cst {dimension_numbers = #tpu.dot_dimension_numbers<[1], [0], [0], [1], [0, 0, 1, 1], [], []>} : vector<16x768xf32>, vector<768x128xf32>, vector<16x128xf32> -> vector<16x128xf32>
    %c0_3 = arith.constant 0 : index
    %c0_4 = arith.constant 0 : index
    %3 = vector.load %arg4[%c0_3, %c0_4] : memref<1x128xf32, #tpu.memory_space<vmem>>, vector<1x128xf32>
    %4 = vector.broadcast %3 : vector<1x128xf32> to vector<16x128xf32>
    %5 = arith.addf %2, %4 : vector<16x128xf32>
    %c0_5 = arith.constant 0 : index
    %c0_6 = arith.constant 0 : index
    %6 = vector.load %arg3[%c0_5, %c0_6] : memref<32x128xf32, #tpu.memory_space<vmem>>, vector<32x128xf32>
    %cst_7 = arith.constant 0.000000e+00 : f32
    %7 = vector.broadcast %cst_7 : f32 to vector<2x32xf32>
    %cst_8 = arith.constant 0.000000e+00 : f32
    %8 = vector.broadcast %cst_8 : f32 to vector<2x32xf32>
    %9 = vector.extract_strided_slice %5 {offsets = [0, 0], sizes = [2, 128], strides = [1, 1]} : vector<16x128xf32> to vector<2x128xf32>
    %cst_9 = arith.constant dense<0.000000e+00> : vector<2x128xf32>
    %10 = tpu.matmul %7, %6, %cst_9 {dimension_numbers = #tpu.dot_dimension_numbers<[1], [0], [0], [1], [0, 0, 1, 1], [], []>} : vector<2x32xf32>, vector<32x128xf32>, vector<2x128xf32> -> vector<2x128xf32>
    %11 = arith.addf %9, %10 : vector<2x128xf32>
    %12 = vector.extract_strided_slice %11 {offsets = [0, 0], sizes = [2, 32], strides = [1, 1]} : vector<2x128xf32> to vector<2x32xf32>
    %13 = arith.negf %12 : vector<2x32xf32>
    %14 = math.exp %13 : vector<2x32xf32>
    %cst_10 = arith.constant 1.000000e+00 : f32
    %15 = vector.broadcast %cst_10 : f32 to vector<2x32xf32>
    %16 = arith.addf %15, %14 : vector<2x32xf32>
    %17 = arith.divf %15, %16 : vector<2x32xf32>
    %18 = vector.extract_strided_slice %11 {offsets = [0, 32], sizes = [2, 32], strides = [1, 1]} : vector<2x128xf32> to vector<2x32xf32>
    %19 = arith.negf %18 : vector<2x32xf32>
    %20 = math.exp %19 : vector<2x32xf32>
    %cst_11 = arith.constant 1.000000e+00 : f32
    %21 = vector.broadcast %cst_11 : f32 to vector<2x32xf32>
    %22 = arith.addf %21, %20 : vector<2x32xf32>
    %23 = arith.divf %21, %22 : vector<2x32xf32>
    %24 = vector.extract_strided_slice %11 {offsets = [0, 64], sizes = [2, 32], strides = [1, 1]} : vector<2x128xf32> to vector<2x32xf32>
    %25 = math.tanh %24 : vector<2x32xf32>
    %26 = vector.extract_strided_slice %11 {offsets = [0, 96], sizes = [2, 32], strides = [1, 1]} : vector<2x128xf32> to vector<2x32xf32>
    %27 = arith.negf %26 : vector<2x32xf32>
    %28 = math.exp %27 : vector<2x32xf32>
    %cst_12 = arith.constant 1.000000e+00 : f32
    %29 = vector.broadcast %cst_12 : f32 to vector<2x32xf32>
    %30 = arith.addf %29, %28 : vector<2x32xf32>
    %31 = arith.divf %29, %30 : vector<2x32xf32>
    %32 = arith.mulf %23, %8 : vector<2x32xf32>
    %33 = arith.mulf %17, %25 : vector<2x32xf32>
    %34 = arith.addf %32, %33 : vector<2x32xf32>
    %35 = math.tanh %34 : vector<2x32xf32>
    %36 = arith.mulf %31, %35 : vector<2x32xf32>
    %c0_13 = arith.constant 0 : index
    %c0_14 = arith.constant 0 : index
    %c0_15 = arith.constant 0 : index
    %37 = vector.load %arg1[%c0_13, %c0_14, %c0_15] : memref<8x2x1xf32, #tpu.memory_space<vmem>>, vector<1x2x1xf32>
    %38 = vector.shape_cast %37 : vector<1x2x1xf32> to vector<2x1xf32>
    %cst_16 = arith.constant 1.000000e+00 : f32
    %39 = vector.broadcast %cst_16 : f32 to vector<2x1xf32>
    %40 = arith.subf %39, %38 : vector<2x1xf32>
    %41 = vector.broadcast %38 : vector<2x1xf32> to vector<2x32xf32>
    %42 = arith.mulf %41, %36 : vector<2x32xf32>
    %43 = vector.broadcast %40 : vector<2x1xf32> to vector<2x32xf32>
    %44 = arith.mulf %43, %7 : vector<2x32xf32>
    %45 = arith.addf %42, %44 : vector<2x32xf32>
    %46 = vector.broadcast %38 : vector<2x1xf32> to vector<2x32xf32>
    %47 = arith.mulf %46, %34 : vector<2x32xf32>
    %48 = vector.broadcast %40 : vector<2x1xf32> to vector<2x32xf32>
    %49 = arith.mulf %48, %8 : vector<2x32xf32>
    %50 = arith.addf %47, %49 : vector<2x32xf32>
    %51 = vector.broadcast %38 : vector<2x1xf32> to vector<2x32xf32>
    %52 = arith.mulf %51, %36 : vector<2x32xf32>
    %c0_17 = arith.constant 0 : index
    %c0_18 = arith.constant 0 : index
    %c0_19 = arith.constant 0 : index
    %53 = vector.load %arg9[%c0_17, %c0_18, %c0_19] : memref<8x2x32xf32, #tpu.memory_space<vmem>>, vector<1x2x32xf32>
    %54 = vector.shape_cast %53 : vector<1x2x32xf32> to vector<2x32xf32>
    %55 = vector.shape_cast %52 : vector<2x32xf32> to vector<1x2x32xf32>
    tpu.vector_store %arg9[%c0_17, %c0_18, %c0_19], %55 {strides = array<i32>} : memref<8x2x32xf32, #tpu.memory_space<vmem>>, vector<1x2x32xf32>,
    %56 = vector.extract_strided_slice %5 {offsets = [2, 0], sizes = [2, 128], strides = [1, 1]} : vector<16x128xf32> to vector<2x128xf32>
    %cst_20 = arith.constant dense<0.000000e+00> : vector<2x128xf32>
    %57 = tpu.matmul %45, %6, %cst_20 {dimension_numbers = #tpu.dot_dimension_numbers<[1], [0], [0], [1], [0, 0, 1, 1], [], []>} : vector<2x32xf32>, vector<32x128xf32>, vector<2x128xf32> -> vector<2x128xf32>
    %58 = arith.addf %56, %57 : vector<2x128xf32>
    %59 = vector.extract_strided_slice %58 {offsets = [0, 0], sizes = [2, 32], strides = [1, 1]} : vector<2x128xf32> to vector<2x32xf32>
    %60 = arith.negf %59 : vector<2x32xf32>
    %61 = math.exp %60 : vector<2x32xf32>
    %cst_21 = arith.constant 1.000000e+00 : f32
    %62 = vector.broadcast %cst_21 : f32 to vector<2x32xf32>
    %63 = arith.addf %62, %61 : vector<2x32xf32>
    %64 = arith.divf %62, %63 : vector<2x32xf32>
    %65 = vector.extract_strided_slice %58 {offsets = [0, 32], sizes = [2, 32], strides = [1, 1]} : vector<2x128xf32> to vector<2x32xf32>
    %66 = arith.negf %65 : vector<2x32xf32>
    %67 = math.exp %66 : vector<2x32xf32>
    %cst_22 = arith.constant 1.000000e+00 : f32
    %68 = vector.broadcast %cst_22 : f32 to vector<2x32xf32>
    %69 = arith.addf %68, %67 : vector<2x32xf32>
    %70 = arith.divf %68, %69 : vector<2x32xf32>
    %71 = vector.extract_strided_slice %58 {offsets = [0, 64], sizes = [2, 32], strides = [1, 1]} : vector<2x128xf32> to vector<2x32xf32>
    %72 = math.tanh %71 : vector<2x32xf32>
    %73 = vector.extract_strided_slice %58 {offsets = [0, 96], sizes = [2, 32], strides = [1, 1]} : vector<2x128xf32> to vector<2x32xf32>
    %74 = arith.negf %73 : vector<2x32xf32>
    %75 = math.exp %74 : vector<2x32xf32>
    %cst_23 = arith.constant 1.000000e+00 : f32
    %76 = vector.broadcast %cst_23 : f32 to vector<2x32xf32>
    %77 = arith.addf %76, %75 : vector<2x32xf32>
    %78 = arith.divf %76, %77 : vector<2x32xf32>
    %79 = arith.mulf %70, %50 : vector<2x32xf32>
    %80 = arith.mulf %64, %72 : vector<2x32xf32>
    %81 = arith.addf %79, %80 : vector<2x32xf32>
    %82 = math.tanh %81 : vector<2x32xf32>
    %83 = arith.mulf %78, %82 : vector<2x32xf32>
    %c1 = arith.constant 1 : index
    %c0_24 = arith.constant 0 : index
    %c0_25 = arith.constant 0 : index
    %84 = vector.load %arg1[%c1, %c0_24, %c0_25] : memref<8x2x1xf32, #tpu.memory_space<vmem>>, vector<1x2x1xf32>
    %85 = vector.shape_cast %84 : vector<1x2x1xf32> to vector<2x1xf32>
    %cst_26 = arith.constant 1.000000e+00 : f32
    %86 = vector.broadcast %cst_26 : f32 to vector<2x1xf32>
    %87 = arith.subf %86, %85 : vector<2x1xf32>
    %88 = vector.broadcast %85 : vector<2x1xf32> to vector<2x32xf32>
    %89 = arith.mulf %88, %83 : vector<2x32xf32>
    %90 = vector.broadcast %87 : vector<2x1xf32> to vector<2x32xf32>
    %91 = arith.mulf %90, %45 : vector<2x32xf32>
    %92 = arith.addf %89, %91 : vector<2x32xf32>
    %93 = vector.broadcast %85 : vector<2x1xf32> to vector<2x32xf32>
    %94 = arith.mulf %93, %81 : vector<2x32xf32>
    %95 = vector.broadcast %87 : vector<2x1xf32> to vector<2x32xf32>
    %96 = arith.mulf %95, %50 : vector<2x32xf32>
    %97 = arith.addf %94, %96 : vector<2x32xf32>
    %98 = vector.broadcast %85 : vector<2x1xf32> to vector<2x32xf32>
    %99 = arith.mulf %98, %83 : vector<2x32xf32>
    %c1_27 = arith.constant 1 : index
    %c0_28 = arith.constant 0 : index
    %c0_29 = arith.constant 0 : index
    %100 = vector.load %arg9[%c1_27, %c0_28, %c0_29] : memref<8x2x32xf32, #tpu.memory_space<vmem>>, vector<1x2x32xf32>
    %101 = vector.shape_cast %100 : vector<1x2x32xf32> to vector<2x32xf32>
    %102 = vector.shape_cast %99 : vector<2x32xf32> to vector<1x2x32xf32>
    tpu.vector_store %arg9[%c1_27, %c0_28, %c0_29], %102 {strides = array<i32>} : memref<8x2x32xf32, #tpu.memory_space<vmem>>, vector<1x2x32xf32>,
    %103 = vector.extract_strided_slice %5 {offsets = [4, 0], sizes = [2, 128], strides = [1, 1]} : vector<16x128xf32> to vector<2x128xf32>
    %cst_30 = arith.constant dense<0.000000e+00> : vector<2x128xf32>
    %104 = tpu.matmul %92, %6, %cst_30 {dimension_numbers = #tpu.dot_dimension_numbers<[1], [0], [0], [1], [0, 0, 1, 1], [], []>} : vector<2x32xf32>, vector<32x128xf32>, vector<2x128xf32> -> vector<2x128xf32>
    %105 = arith.addf %103, %104 : vector<2x128xf32>
    %106 = vector.extract_strided_slice %105 {offsets = [0, 0], sizes = [2, 32], strides = [1, 1]} : vector<2x128xf32> to vector<2x32xf32>
    %107 = arith.negf %106 : vector<2x32xf32>
    %108 = math.exp %107 : vector<2x32xf32>
    %cst_31 = arith.constant 1.000000e+00 : f32
    %109 = vector.broadcast %cst_31 : f32 to vector<2x32xf32>
    %110 = arith.addf %109, %108 : vector<2x32xf32>
    %111 = arith.divf %109, %110 : vector<2x32xf32>
    %112 = vector.extract_strided_slice %105 {offsets = [0, 32], sizes = [2, 32], strides = [1, 1]} : vector<2x128xf32> to vector<2x32xf32>
    %113 = arith.negf %112 : vector<2x32xf32>
    %114 = math.exp %113 : vector<2x32xf32>
    %cst_32 = arith.constant 1.000000e+00 : f32
    %115 = vector.broadcast %cst_32 : f32 to vector<2x32xf32>
    %116 = arith.addf %115, %114 : vector<2x32xf32>
    %117 = arith.divf %115, %116 : vector<2x32xf32>
    %118 = vector.extract_strided_slice %105 {offsets = [0, 64], sizes = [2, 32], strides = [1, 1]} : vector<2x128xf32> to vector<2x32xf32>
    %119 = math.tanh %118 : vector<2x32xf32>
    %120 = vector.extract_strided_slice %105 {offsets = [0, 96], sizes = [2, 32], strides = [1, 1]} : vector<2x128xf32> to vector<2x32xf32>
    %121 = arith.negf %120 : vector<2x32xf32>
    %122 = math.exp %121 : vector<2x32xf32>
    %cst_33 = arith.constant 1.000000e+00 : f32
    %123 = vector.broadcast %cst_33 : f32 to vector<2x32xf32>
    %124 = arith.addf %123, %122 : vector<2x32xf32>
    %125 = arith.divf %123, %124 : vector<2x32xf32>
    %126 = arith.mulf %117, %97 : vector<2x32xf32>
    %127 = arith.mulf %111, %119 : vector<2x32xf32>
    %128 = arith.addf %126, %127 : vector<2x32xf32>
    %129 = math.tanh %128 : vector<2x32xf32>
    %130 = arith.mulf %125, %129 : vector<2x32xf32>
    %c2 = arith.constant 2 : index
    %c0_34 = arith.constant 0 : index
    %c0_35 = arith.constant 0 : index
    %131 = vector.load %arg1[%c2, %c0_34, %c0_35] : memref<8x2x1xf32, #tpu.memory_space<vmem>>, vector<1x2x1xf32>
    %132 = vector.shape_cast %131 : vector<1x2x1xf32> to vector<2x1xf32>
    %cst_36 = arith.constant 1.000000e+00 : f32
    %133 = vector.broadcast %cst_36 : f32 to vector<2x1xf32>
    %134 = arith.subf %133, %132 : vector<2x1xf32>
    %135 = vector.broadcast %132 : vector<2x1xf32> to vector<2x32xf32>
    %136 = arith.mulf %135, %130 : vector<2x32xf32>
    %137 = vector.broadcast %134 : vector<2x1xf32> to vector<2x32xf32>
    %138 = arith.mulf %137, %92 : vector<2x32xf32>
    %139 = arith.addf %136, %138 : vector<2x32xf32>
    %140 = vector.broadcast %132 : vector<2x1xf32> to vector<2x32xf32>
    %141 = arith.mulf %140, %128 : vector<2x32xf32>
    %142 = vector.broadcast %134 : vector<2x1xf32> to vector<2x32xf32>
    %143 = arith.mulf %142, %97 : vector<2x32xf32>
    %144 = arith.addf %141, %143 : vector<2x32xf32>
    %145 = vector.broadcast %132 : vector<2x1xf32> to vector<2x32xf32>
    %146 = arith.mulf %145, %130 : vector<2x32xf32>
    %c2_37 = arith.constant 2 : index
    %c0_38 = arith.constant 0 : index
    %c0_39 = arith.constant 0 : index
    %147 = vector.load %arg9[%c2_37, %c0_38, %c0_39] : memref<8x2x32xf32, #tpu.memory_space<vmem>>, vector<1x2x32xf32>
    %148 = vector.shape_cast %147 : vector<1x2x32xf32> to vector<2x32xf32>
    %149 = vector.shape_cast %146 : vector<2x32xf32> to vector<1x2x32xf32>
    tpu.vector_store %arg9[%c2_37, %c0_38, %c0_39], %149 {strides = array<i32>} : memref<8x2x32xf32, #tpu.memory_space<vmem>>, vector<1x2x32xf32>,
    %150 = vector.extract_strided_slice %5 {offsets = [6, 0], sizes = [2, 128], strides = [1, 1]} : vector<16x128xf32> to vector<2x128xf32>
    %cst_40 = arith.constant dense<0.000000e+00> : vector<2x128xf32>
    %151 = tpu.matmul %139, %6, %cst_40 {dimension_numbers = #tpu.dot_dimension_numbers<[1], [0], [0], [1], [0, 0, 1, 1], [], []>} : vector<2x32xf32>, vector<32x128xf32>, vector<2x128xf32> -> vector<2x128xf32>
    %152 = arith.addf %150, %151 : vector<2x128xf32>
    %153 = vector.extract_strided_slice %152 {offsets = [0, 0], sizes = [2, 32], strides = [1, 1]} : vector<2x128xf32> to vector<2x32xf32>
    %154 = arith.negf %153 : vector<2x32xf32>
    %155 = math.exp %154 : vector<2x32xf32>
    %cst_41 = arith.constant 1.000000e+00 : f32
    %156 = vector.broadcast %cst_41 : f32 to vector<2x32xf32>
    %157 = arith.addf %156, %155 : vector<2x32xf32>
    %158 = arith.divf %156, %157 : vector<2x32xf32>
    %159 = vector.extract_strided_slice %152 {offsets = [0, 32], sizes = [2, 32], strides = [1, 1]} : vector<2x128xf32> to vector<2x32xf32>
    %160 = arith.negf %159 : vector<2x32xf32>
    %161 = math.exp %160 : vector<2x32xf32>
    %cst_42 = arith.constant 1.000000e+00 : f32
    %162 = vector.broadcast %cst_42 : f32 to vector<2x32xf32>
    %163 = arith.addf %162, %161 : vector<2x32xf32>
    %164 = arith.divf %162, %163 : vector<2x32xf32>
    %165 = vector.extract_strided_slice %152 {offsets = [0, 64], sizes = [2, 32], strides = [1, 1]} : vector<2x128xf32> to vector<2x32xf32>
    %166 = math.tanh %165 : vector<2x32xf32>
    %167 = vector.extract_strided_slice %152 {offsets = [0, 96], sizes = [2, 32], strides = [1, 1]} : vector<2x128xf32> to vector<2x32xf32>
    %168 = arith.negf %167 : vector<2x32xf32>
    %169 = math.exp %168 : vector<2x32xf32>
    %cst_43 = arith.constant 1.000000e+00 : f32
    %170 = vector.broadcast %cst_43 : f32 to vector<2x32xf32>
    %171 = arith.addf %170, %169 : vector<2x32xf32>
    %172 = arith.divf %170, %171 : vector<2x32xf32>
    %173 = arith.mulf %164, %144 : vector<2x32xf32>
    %174 = arith.mulf %158, %166 : vector<2x32xf32>
    %175 = arith.addf %173, %174 : vector<2x32xf32>
    %176 = math.tanh %175 : vector<2x32xf32>
    %177 = arith.mulf %172, %176 : vector<2x32xf32>
    %c3 = arith.constant 3 : index
    %c0_44 = arith.constant 0 : index
    %c0_45 = arith.constant 0 : index
    %178 = vector.load %arg1[%c3, %c0_44, %c0_45] : memref<8x2x1xf32, #tpu.memory_space<vmem>>, vector<1x2x1xf32>
    %179 = vector.shape_cast %178 : vector<1x2x1xf32> to vector<2x1xf32>
    %cst_46 = arith.constant 1.000000e+00 : f32
    %180 = vector.broadcast %cst_46 : f32 to vector<2x1xf32>
    %181 = arith.subf %180, %179 : vector<2x1xf32>
    %182 = vector.broadcast %179 : vector<2x1xf32> to vector<2x32xf32>
    %183 = arith.mulf %182, %177 : vector<2x32xf32>
    %184 = vector.broadcast %181 : vector<2x1xf32> to vector<2x32xf32>
    %185 = arith.mulf %184, %139 : vector<2x32xf32>
    %186 = arith.addf %183, %185 : vector<2x32xf32>
    %187 = vector.broadcast %179 : vector<2x1xf32> to vector<2x32xf32>
    %188 = arith.mulf %187, %175 : vector<2x32xf32>
    %189 = vector.broadcast %181 : vector<2x1xf32> to vector<2x32xf32>
    %190 = arith.mulf %189, %144 : vector<2x32xf32>
    %191 = arith.addf %188, %190 : vector<2x32xf32>
    %192 = vector.broadcast %179 : vector<2x1xf32> to vector<2x32xf32>
    %193 = arith.mulf %192, %177 : vector<2x32xf32>
    %c3_47 = arith.constant 3 : index
    %c0_48 = arith.constant 0 : index
    %c0_49 = arith.constant 0 : index
    %194 = vector.load %arg9[%c3_47, %c0_48, %c0_49] : memref<8x2x32xf32, #tpu.memory_space<vmem>>, vector<1x2x32xf32>
    %195 = vector.shape_cast %194 : vector<1x2x32xf32> to vector<2x32xf32>
    %196 = vector.shape_cast %193 : vector<2x32xf32> to vector<1x2x32xf32>
    tpu.vector_store %arg9[%c3_47, %c0_48, %c0_49], %196 {strides = array<i32>} : memref<8x2x32xf32, #tpu.memory_space<vmem>>, vector<1x2x32xf32>,
    %197 = vector.extract_strided_slice %5 {offsets = [8, 0], sizes = [2, 128], strides = [1, 1]} : vector<16x128xf32> to vector<2x128xf32>
    %cst_50 = arith.constant dense<0.000000e+00> : vector<2x128xf32>
    %198 = tpu.matmul %186, %6, %cst_50 {dimension_numbers = #tpu.dot_dimension_numbers<[1], [0], [0], [1], [0, 0, 1, 1], [], []>} : vector<2x32xf32>, vector<32x128xf32>, vector<2x128xf32> -> vector<2x128xf32>
    %199 = arith.addf %197, %198 : vector<2x128xf32>
    %200 = vector.extract_strided_slice %199 {offsets = [0, 0], sizes = [2, 32], strides = [1, 1]} : vector<2x128xf32> to vector<2x32xf32>
    %201 = arith.negf %200 : vector<2x32xf32>
    %202 = math.exp %201 : vector<2x32xf32>
    %cst_51 = arith.constant 1.000000e+00 : f32
    %203 = vector.broadcast %cst_51 : f32 to vector<2x32xf32>
    %204 = arith.addf %203, %202 : vector<2x32xf32>
    %205 = arith.divf %203, %204 : vector<2x32xf32>
    %206 = vector.extract_strided_slice %199 {offsets = [0, 32], sizes = [2, 32], strides = [1, 1]} : vector<2x128xf32> to vector<2x32xf32>
    %207 = arith.negf %206 : vector<2x32xf32>
    %208 = math.exp %207 : vector<2x32xf32>
    %cst_52 = arith.constant 1.000000e+00 : f32
    %209 = vector.broadcast %cst_52 : f32 to vector<2x32xf32>
    %210 = arith.addf %209, %208 : vector<2x32xf32>
    %211 = arith.divf %209, %210 : vector<2x32xf32>
    %212 = vector.extract_strided_slice %199 {offsets = [0, 64], sizes = [2, 32], strides = [1, 1]} : vector<2x128xf32> to vector<2x32xf32>
    %213 = math.tanh %212 : vector<2x32xf32>
    %214 = vector.extract_strided_slice %199 {offsets = [0, 96], sizes = [2, 32], strides = [1, 1]} : vector<2x128xf32> to vector<2x32xf32>
    %215 = arith.negf %214 : vector<2x32xf32>
    %216 = math.exp %215 : vector<2x32xf32>
    %cst_53 = arith.constant 1.000000e+00 : f32
    %217 = vector.broadcast %cst_53 : f32 to vector<2x32xf32>
    %218 = arith.addf %217, %216 : vector<2x32xf32>
    %219 = arith.divf %217, %218 : vector<2x32xf32>
    %220 = arith.mulf %211, %191 : vector<2x32xf32>
    %221 = arith.mulf %205, %213 : vector<2x32xf32>
    %222 = arith.addf %220, %221 : vector<2x32xf32>
    %223 = math.tanh %222 : vector<2x32xf32>
    %224 = arith.mulf %219, %223 : vector<2x32xf32>
    %c4 = arith.constant 4 : index
    %c0_54 = arith.constant 0 : index
    %c0_55 = arith.constant 0 : index
    %225 = vector.load %arg1[%c4, %c0_54, %c0_55] : memref<8x2x1xf32, #tpu.memory_space<vmem>>, vector<1x2x1xf32>
    %226 = vector.shape_cast %225 : vector<1x2x1xf32> to vector<2x1xf32>
    %cst_56 = arith.constant 1.000000e+00 : f32
    %227 = vector.broadcast %cst_56 : f32 to vector<2x1xf32>
    %228 = arith.subf %227, %226 : vector<2x1xf32>
    %229 = vector.broadcast %226 : vector<2x1xf32> to vector<2x32xf32>
    %230 = arith.mulf %229, %224 : vector<2x32xf32>
    %231 = vector.broadcast %228 : vector<2x1xf32> to vector<2x32xf32>
    %232 = arith.mulf %231, %186 : vector<2x32xf32>
    %233 = arith.addf %230, %232 : vector<2x32xf32>
    %234 = vector.broadcast %226 : vector<2x1xf32> to vector<2x32xf32>
    %235 = arith.mulf %234, %222 : vector<2x32xf32>
    %236 = vector.broadcast %228 : vector<2x1xf32> to vector<2x32xf32>
    %237 = arith.mulf %236, %191 : vector<2x32xf32>
    %238 = arith.addf %235, %237 : vector<2x32xf32>
    %239 = vector.broadcast %226 : vector<2x1xf32> to vector<2x32xf32>
    %240 = arith.mulf %239, %224 : vector<2x32xf32>
    %c4_57 = arith.constant 4 : index
    %c0_58 = arith.constant 0 : index
    %c0_59 = arith.constant 0 : index
    %241 = vector.load %arg9[%c4_57, %c0_58, %c0_59] : memref<8x2x32xf32, #tpu.memory_space<vmem>>, vector<1x2x32xf32>
    %242 = vector.shape_cast %241 : vector<1x2x32xf32> to vector<2x32xf32>
    %243 = vector.shape_cast %240 : vector<2x32xf32> to vector<1x2x32xf32>
    tpu.vector_store %arg9[%c4_57, %c0_58, %c0_59], %243 {strides = array<i32>} : memref<8x2x32xf32, #tpu.memory_space<vmem>>, vector<1x2x32xf32>,
    %244 = vector.extract_strided_slice %5 {offsets = [10, 0], sizes = [2, 128], strides = [1, 1]} : vector<16x128xf32> to vector<2x128xf32>
    %cst_60 = arith.constant dense<0.000000e+00> : vector<2x128xf32>
    %245 = tpu.matmul %233, %6, %cst_60 {dimension_numbers = #tpu.dot_dimension_numbers<[1], [0], [0], [1], [0, 0, 1, 1], [], []>} : vector<2x32xf32>, vector<32x128xf32>, vector<2x128xf32> -> vector<2x128xf32>
    %246 = arith.addf %244, %245 : vector<2x128xf32>
    %247 = vector.extract_strided_slice %246 {offsets = [0, 0], sizes = [2, 32], strides = [1, 1]} : vector<2x128xf32> to vector<2x32xf32>
    %248 = arith.negf %247 : vector<2x32xf32>
    %249 = math.exp %248 : vector<2x32xf32>
    %cst_61 = arith.constant 1.000000e+00 : f32
    %250 = vector.broadcast %cst_61 : f32 to vector<2x32xf32>
    %251 = arith.addf %250, %249 : vector<2x32xf32>
    %252 = arith.divf %250, %251 : vector<2x32xf32>
    %253 = vector.extract_strided_slice %246 {offsets = [0, 32], sizes = [2, 32], strides = [1, 1]} : vector<2x128xf32> to vector<2x32xf32>
    %254 = arith.negf %253 : vector<2x32xf32>
    %255 = math.exp %254 : vector<2x32xf32>
    %cst_62 = arith.constant 1.000000e+00 : f32
    %256 = vector.broadcast %cst_62 : f32 to vector<2x32xf32>
    %257 = arith.addf %256, %255 : vector<2x32xf32>
    %258 = arith.divf %256, %257 : vector<2x32xf32>
    %259 = vector.extract_strided_slice %246 {offsets = [0, 64], sizes = [2, 32], strides = [1, 1]} : vector<2x128xf32> to vector<2x32xf32>
    %260 = math.tanh %259 : vector<2x32xf32>
    %261 = vector.extract_strided_slice %246 {offsets = [0, 96], sizes = [2, 32], strides = [1, 1]} : vector<2x128xf32> to vector<2x32xf32>
    %262 = arith.negf %261 : vector<2x32xf32>
    %263 = math.exp %262 : vector<2x32xf32>
    %cst_63 = arith.constant 1.000000e+00 : f32
    %264 = vector.broadcast %cst_63 : f32 to vector<2x32xf32>
    %265 = arith.addf %264, %263 : vector<2x32xf32>
    %266 = arith.divf %264, %265 : vector<2x32xf32>
    %267 = arith.mulf %258, %238 : vector<2x32xf32>
    %268 = arith.mulf %252, %260 : vector<2x32xf32>
    %269 = arith.addf %267, %268 : vector<2x32xf32>
    %270 = math.tanh %269 : vector<2x32xf32>
    %271 = arith.mulf %266, %270 : vector<2x32xf32>
    %c5 = arith.constant 5 : index
    %c0_64 = arith.constant 0 : index
    %c0_65 = arith.constant 0 : index
    %272 = vector.load %arg1[%c5, %c0_64, %c0_65] : memref<8x2x1xf32, #tpu.memory_space<vmem>>, vector<1x2x1xf32>
    %273 = vector.shape_cast %272 : vector<1x2x1xf32> to vector<2x1xf32>
    %cst_66 = arith.constant 1.000000e+00 : f32
    %274 = vector.broadcast %cst_66 : f32 to vector<2x1xf32>
    %275 = arith.subf %274, %273 : vector<2x1xf32>
    %276 = vector.broadcast %273 : vector<2x1xf32> to vector<2x32xf32>
    %277 = arith.mulf %276, %271 : vector<2x32xf32>
    %278 = vector.broadcast %275 : vector<2x1xf32> to vector<2x32xf32>
    %279 = arith.mulf %278, %233 : vector<2x32xf32>
    %280 = arith.addf %277, %279 : vector<2x32xf32>
    %281 = vector.broadcast %273 : vector<2x1xf32> to vector<2x32xf32>
    %282 = arith.mulf %281, %269 : vector<2x32xf32>
    %283 = vector.broadcast %275 : vector<2x1xf32> to vector<2x32xf32>
    %284 = arith.mulf %283, %238 : vector<2x32xf32>
    %285 = arith.addf %282, %284 : vector<2x32xf32>
    %286 = vector.broadcast %273 : vector<2x1xf32> to vector<2x32xf32>
    %287 = arith.mulf %286, %271 : vector<2x32xf32>
    %c5_67 = arith.constant 5 : index
    %c0_68 = arith.constant 0 : index
    %c0_69 = arith.constant 0 : index
    %288 = vector.load %arg9[%c5_67, %c0_68, %c0_69] : memref<8x2x32xf32, #tpu.memory_space<vmem>>, vector<1x2x32xf32>
    %289 = vector.shape_cast %288 : vector<1x2x32xf32> to vector<2x32xf32>
    %290 = vector.shape_cast %287 : vector<2x32xf32> to vector<1x2x32xf32>
    tpu.vector_store %arg9[%c5_67, %c0_68, %c0_69], %290 {strides = array<i32>} : memref<8x2x32xf32, #tpu.memory_space<vmem>>, vector<1x2x32xf32>,
    %291 = vector.extract_strided_slice %5 {offsets = [12, 0], sizes = [2, 128], strides = [1, 1]} : vector<16x128xf32> to vector<2x128xf32>
    %cst_70 = arith.constant dense<0.000000e+00> : vector<2x128xf32>
    %292 = tpu.matmul %280, %6, %cst_70 {dimension_numbers = #tpu.dot_dimension_numbers<[1], [0], [0], [1], [0, 0, 1, 1], [], []>} : vector<2x32xf32>, vector<32x128xf32>, vector<2x128xf32> -> vector<2x128xf32>
    %293 = arith.addf %291, %292 : vector<2x128xf32>
    %294 = vector.extract_strided_slice %293 {offsets = [0, 0], sizes = [2, 32], strides = [1, 1]} : vector<2x128xf32> to vector<2x32xf32>
    %295 = arith.negf %294 : vector<2x32xf32>
    %296 = math.exp %295 : vector<2x32xf32>
    %cst_71 = arith.constant 1.000000e+00 : f32
    %297 = vector.broadcast %cst_71 : f32 to vector<2x32xf32>
    %298 = arith.addf %297, %296 : vector<2x32xf32>
    %299 = arith.divf %297, %298 : vector<2x32xf32>
    %300 = vector.extract_strided_slice %293 {offsets = [0, 32], sizes = [2, 32], strides = [1, 1]} : vector<2x128xf32> to vector<2x32xf32>
    %301 = arith.negf %300 : vector<2x32xf32>
    %302 = math.exp %301 : vector<2x32xf32>
    %cst_72 = arith.constant 1.000000e+00 : f32
    %303 = vector.broadcast %cst_72 : f32 to vector<2x32xf32>
    %304 = arith.addf %303, %302 : vector<2x32xf32>
    %305 = arith.divf %303, %304 : vector<2x32xf32>
    %306 = vector.extract_strided_slice %293 {offsets = [0, 64], sizes = [2, 32], strides = [1, 1]} : vector<2x128xf32> to vector<2x32xf32>
    %307 = math.tanh %306 : vector<2x32xf32>
    %308 = vector.extract_strided_slice %293 {offsets = [0, 96], sizes = [2, 32], strides = [1, 1]} : vector<2x128xf32> to vector<2x32xf32>
    %309 = arith.negf %308 : vector<2x32xf32>
    %310 = math.exp %309 : vector<2x32xf32>
    %cst_73 = arith.constant 1.000000e+00 : f32
    %311 = vector.broadcast %cst_73 : f32 to vector<2x32xf32>
    %312 = arith.addf %311, %310 : vector<2x32xf32>
    %313 = arith.divf %311, %312 : vector<2x32xf32>
    %314 = arith.mulf %305, %285 : vector<2x32xf32>
    %315 = arith.mulf %299, %307 : vector<2x32xf32>
    %316 = arith.addf %314, %315 : vector<2x32xf32>
    %317 = math.tanh %316 : vector<2x32xf32>
    %318 = arith.mulf %313, %317 : vector<2x32xf32>
    %c6 = arith.constant 6 : index
    %c0_74 = arith.constant 0 : index
    %c0_75 = arith.constant 0 : index
    %319 = vector.load %arg1[%c6, %c0_74, %c0_75] : memref<8x2x1xf32, #tpu.memory_space<vmem>>, vector<1x2x1xf32>
    %320 = vector.shape_cast %319 : vector<1x2x1xf32> to vector<2x1xf32>
    %cst_76 = arith.constant 1.000000e+00 : f32
    %321 = vector.broadcast %cst_76 : f32 to vector<2x1xf32>
    %322 = arith.subf %321, %320 : vector<2x1xf32>
    %323 = vector.broadcast %320 : vector<2x1xf32> to vector<2x32xf32>
    %324 = arith.mulf %323, %318 : vector<2x32xf32>
    %325 = vector.broadcast %322 : vector<2x1xf32> to vector<2x32xf32>
    %326 = arith.mulf %325, %280 : vector<2x32xf32>
    %327 = arith.addf %324, %326 : vector<2x32xf32>
    %328 = vector.broadcast %320 : vector<2x1xf32> to vector<2x32xf32>
    %329 = arith.mulf %328, %316 : vector<2x32xf32>
    %330 = vector.broadcast %322 : vector<2x1xf32> to vector<2x32xf32>
    %331 = arith.mulf %330, %285 : vector<2x32xf32>
    %332 = arith.addf %329, %331 : vector<2x32xf32>
    %333 = vector.broadcast %320 : vector<2x1xf32> to vector<2x32xf32>
    %334 = arith.mulf %333, %318 : vector<2x32xf32>
    %c6_77 = arith.constant 6 : index
    %c0_78 = arith.constant 0 : index
    %c0_79 = arith.constant 0 : index
    %335 = vector.load %arg9[%c6_77, %c0_78, %c0_79] : memref<8x2x32xf32, #tpu.memory_space<vmem>>, vector<1x2x32xf32>
    %336 = vector.shape_cast %335 : vector<1x2x32xf32> to vector<2x32xf32>
    %337 = vector.shape_cast %334 : vector<2x32xf32> to vector<1x2x32xf32>
    tpu.vector_store %arg9[%c6_77, %c0_78, %c0_79], %337 {strides = array<i32>} : memref<8x2x32xf32, #tpu.memory_space<vmem>>, vector<1x2x32xf32>,
    %338 = vector.extract_strided_slice %5 {offsets = [14, 0], sizes = [2, 128], strides = [1, 1]} : vector<16x128xf32> to vector<2x128xf32>
    %cst_80 = arith.constant dense<0.000000e+00> : vector<2x128xf32>
    %339 = tpu.matmul %327, %6, %cst_80 {dimension_numbers = #tpu.dot_dimension_numbers<[1], [0], [0], [1], [0, 0, 1, 1], [], []>} : vector<2x32xf32>, vector<32x128xf32>, vector<2x128xf32> -> vector<2x128xf32>
    %340 = arith.addf %338, %339 : vector<2x128xf32>
    %341 = vector.extract_strided_slice %340 {offsets = [0, 0], sizes = [2, 32], strides = [1, 1]} : vector<2x128xf32> to vector<2x32xf32>
    %342 = arith.negf %341 : vector<2x32xf32>
    %343 = math.exp %342 : vector<2x32xf32>
    %cst_81 = arith.constant 1.000000e+00 : f32
    %344 = vector.broadcast %cst_81 : f32 to vector<2x32xf32>
    %345 = arith.addf %344, %343 : vector<2x32xf32>
    %346 = arith.divf %344, %345 : vector<2x32xf32>
    %347 = vector.extract_strided_slice %340 {offsets = [0, 32], sizes = [2, 32], strides = [1, 1]} : vector<2x128xf32> to vector<2x32xf32>
    %348 = arith.negf %347 : vector<2x32xf32>
    %349 = math.exp %348 : vector<2x32xf32>
    %cst_82 = arith.constant 1.000000e+00 : f32
    %350 = vector.broadcast %cst_82 : f32 to vector<2x32xf32>
    %351 = arith.addf %350, %349 : vector<2x32xf32>
    %352 = arith.divf %350, %351 : vector<2x32xf32>
    %353 = vector.extract_strided_slice %340 {offsets = [0, 64], sizes = [2, 32], strides = [1, 1]} : vector<2x128xf32> to vector<2x32xf32>
    %354 = math.tanh %353 : vector<2x32xf32>
    %355 = vector.extract_strided_slice %340 {offsets = [0, 96], sizes = [2, 32], strides = [1, 1]} : vector<2x128xf32> to vector<2x32xf32>
    %356 = arith.negf %355 : vector<2x32xf32>
    %357 = math.exp %356 : vector<2x32xf32>
    %cst_83 = arith.constant 1.000000e+00 : f32
    %358 = vector.broadcast %cst_83 : f32 to vector<2x32xf32>
    %359 = arith.addf %358, %357 : vector<2x32xf32>
    %360 = arith.divf %358, %359 : vector<2x32xf32>
    %361 = arith.mulf %352, %332 : vector<2x32xf32>
    %362 = arith.mulf %346, %354 : vector<2x32xf32>
    %363 = arith.addf %361, %362 : vector<2x32xf32>
    %364 = math.tanh %363 : vector<2x32xf32>
    %365 = arith.mulf %360, %364 : vector<2x32xf32>
    %c7 = arith.constant 7 : index
    %c0_84 = arith.constant 0 : index
    %c0_85 = arith.constant 0 : index
    %366 = vector.load %arg1[%c7, %c0_84, %c0_85] : memref<8x2x1xf32, #tpu.memory_space<vmem>>, vector<1x2x1xf32>
    %367 = vector.shape_cast %366 : vector<1x2x1xf32> to vector<2x1xf32>
    %cst_86 = arith.constant 1.000000e+00 : f32
    %368 = vector.broadcast %cst_86 : f32 to vector<2x1xf32>
    %369 = arith.subf %368, %367 : vector<2x1xf32>
    %370 = vector.broadcast %367 : vector<2x1xf32> to vector<2x32xf32>
    %371 = arith.mulf %370, %365 : vector<2x32xf32>
    %372 = vector.broadcast %369 : vector<2x1xf32> to vector<2x32xf32>
    %373 = arith.mulf %372, %327 : vector<2x32xf32>
    %374 = arith.addf %371, %373 : vector<2x32xf32>
    %375 = vector.broadcast %367 : vector<2x1xf32> to vector<2x32xf32>
    %376 = arith.mulf %375, %363 : vector<2x32xf32>
    %377 = vector.broadcast %369 : vector<2x1xf32> to vector<2x32xf32>
    %378 = arith.mulf %377, %332 : vector<2x32xf32>
    %379 = arith.addf %376, %378 : vector<2x32xf32>
    %380 = vector.broadcast %367 : vector<2x1xf32> to vector<2x32xf32>
    %381 = arith.mulf %380, %365 : vector<2x32xf32>
    %c7_87 = arith.constant 7 : index
    %c0_88 = arith.constant 0 : index
    %c0_89 = arith.constant 0 : index
    %382 = vector.load %arg9[%c7_87, %c0_88, %c0_89] : memref<8x2x32xf32, #tpu.memory_space<vmem>>, vector<1x2x32xf32>
    %383 = vector.shape_cast %382 : vector<1x2x32xf32> to vector<2x32xf32>
    %384 = vector.shape_cast %381 : vector<2x32xf32> to vector<1x2x32xf32>
    tpu.vector_store %arg9[%c7_87, %c0_88, %c0_89], %384 {strides = array<i32>} : memref<8x2x32xf32, #tpu.memory_space<vmem>>, vector<1x2x32xf32>,
    %c0_90 = arith.constant 0 : index
    %c0_91 = arith.constant 0 : index
    %385 = vector.load %arg5[%c0_90, %c0_91] : memref<32x64xf32, #tpu.memory_space<vmem>>, vector<32x64xf32>
    %cst_92 = arith.constant dense<0.000000e+00> : vector<2x64xf32>
    %386 = tpu.matmul %374, %385, %cst_92 {dimension_numbers = #tpu.dot_dimension_numbers<[1], [0], [0], [1], [0, 0, 1, 1], [], []>} : vector<2x32xf32>, vector<32x64xf32>, vector<2x64xf32> -> vector<2x64xf32>
    %c0_93 = arith.constant 0 : index
    %c0_94 = arith.constant 0 : index
    %387 = vector.load %arg6[%c0_93, %c0_94] : memref<1x64xf32, #tpu.memory_space<vmem>>, vector<1x64xf32>
    %388 = vector.broadcast %387 : vector<1x64xf32> to vector<2x64xf32>
    %389 = arith.addf %386, %388 : vector<2x64xf32>
    %390 = math.tanh %389 : vector<2x64xf32>
    %c0_95 = arith.constant 0 : index
    %c0_96 = arith.constant 0 : index
    %391 = vector.load %arg10[%c0_95, %c0_96] : memref<2x64xf32, #tpu.memory_space<vmem>>, vector<2x64xf32>
    tpu.vector_store %arg10[%c0_95, %c0_96], %390 {strides = array<i32>} : memref<2x64xf32, #tpu.memory_space<vmem>>, vector<2x64xf32>,
    %c0_97 = arith.constant 0 : index
    %c0_98 = arith.constant 0 : index
    %392 = vector.load %arg7[%c0_97, %c0_98] : memref<32x64xf32, #tpu.memory_space<vmem>>, vector<32x64xf32>
    %cst_99 = arith.constant dense<0.000000e+00> : vector<2x64xf32>
    %393 = tpu.matmul %379, %392, %cst_99 {dimension_numbers = #tpu.dot_dimension_numbers<[1], [0], [0], [1], [0, 0, 1, 1], [], []>} : vector<2x32xf32>, vector<32x64xf32>, vector<2x64xf32> -> vector<2x64xf32>
    %c0_100 = arith.constant 0 : index
    %c0_101 = arith.constant 0 : index
    %394 = vector.load %arg8[%c0_100, %c0_101] : memref<1x64xf32, #tpu.memory_space<vmem>>, vector<1x64xf32>
    %395 = vector.broadcast %394 : vector<1x64xf32> to vector<2x64xf32>
    %396 = arith.addf %393, %395 : vector<2x64xf32>
    %c0_102 = arith.constant 0 : index
    %c0_103 = arith.constant 0 : index
    %397 = vector.load %arg11[%c0_102, %c0_103] : memref<2x64xf32, #tpu.memory_space<vmem>>, vector<2x64xf32>
    tpu.vector_store %arg11[%c0_102, %c0_103], %396 {strides = array<i32>} : memref<2x64xf32, #tpu.memory_space<vmem>>, vector<2x64xf32>,
    return
  }
}

</mosaic_0001>

<llo_original>
// kernel: oscar_encoder_forward.1
$region0: #{oscar_encoder_forward.1}
  #allocation0 [shape = 'u32[]', space=smem, size = 0x4, offset = 0x4, fixed_abs, tag = 'smem constant byte address 0x4 - core index']
  #allocation1 [shape = 'u32[144,128]{1,0:T(1,128)}', space=vmem, size = 0x12000, scoped, tag = 'internal scratch']
  %s0 = inlined_call_operand.vmem [shape: f32[16,768], index: 0, kind: input, shape index: {}]
  %s1 = inlined_call_operand.vmem [shape: f32[8,2,1], index: 1, kind: input, shape index: {}]
  %s2 = inlined_call_operand.vmem [shape: f32[768,128], index: 2, kind: input, shape index: {}]
  %s3 = inlined_call_operand.vmem [shape: f32[32,128], index: 3, kind: input, shape index: {}]
  %s4 = inlined_call_operand.vmem [shape: f32[1,128], index: 4, kind: input, shape index: {}]
  %s5 = inlined_call_operand.vmem [shape: f32[32,64], index: 5, kind: input, shape index: {}]
  %s6 = inlined_call_operand.vmem [shape: f32[1,64], index: 6, kind: input, shape index: {}]
  %s7 = inlined_call_operand.vmem [shape: f32[32,64], index: 7, kind: input, shape index: {}]
  %s8 = inlined_call_operand.vmem [shape: f32[1,64], index: 8, kind: input, shape index: {}]
  %s9 = inlined_call_operand.vmem [shape: f32[8,2,32], index: 9, kind: output, shape index: {0}]
  %s10 = inlined_call_operand.hbm [shape: f32[2,64], index: 10, kind: output, shape index: {1}]
  %s11 = inlined_call_operand.hbm [shape: f32[2,64], index: 11, kind: output, shape index: {2}]
  %12 = xla_tuple %s9, %s10, %s11
  %s13 = sld [smem:[#allocation0]]
  $region62: #{oscar_encoder_forward.1} parent=0
    _
  %s15 = ssub.s32 1, %s13
  %s16 = scalar_select 0, %s15, %s13
  $region1: #{oscar_encoder_forward.1} parent=0
    #allocation2 [shape = 'u8[1024]{0}', space=vmem, size = 0x400, scoped, tag = 'output window, operand 1, single buffered']
    #allocation3 [shape = 's32[1]{0}', space=sflag, size = 0x4, scoped, tag = 'scoped memory for oscar_encoder_forward.1']
    #allocation4 [shape = 'u8[1024]{0}', space=vmem, size = 0x400, scoped, tag = 'output window, operand 2, single buffered']
    #allocation5 [shape = 's32[1]{0}', space=sflag, size = 0x4, scoped, tag = 'scoped memory for oscar_encoder_forward.1']
    %17 = vsyncpa [#allocation3], 0
    %18 = vsyncpa [#allocation5], 0
    // Predicated region
    $region2: #{oscar_encoder_forward.1} parent=1 // pred_check
      _
    $region3: #{oscar_encoder_forward.1} parent=1 // pred_check_branch
      %20 = sbr.rel (0) target = $region5
    $region4: #{oscar_encoder_forward.1} parent=1 // pred_region
      _
    $region5: #{oscar_encoder_forward.1} parent=1 // pred_fallthru
      _
    // Predicated region
    $region6: #{oscar_encoder_forward.1} parent=1 // pred_check
      _
    $region7: #{oscar_encoder_forward.1} parent=1 // pred_check_branch
      %22 = sbr.rel (0) target = $region9
    $region8: #{oscar_encoder_forward.1} parent=1 // pred_region
      _
    $region9: #{oscar_encoder_forward.1} parent=1 // pred_fallthru
      _
    // Predicated region
    $region10: #{oscar_encoder_forward.1} parent=1 // pred_check
      _
    $region11: #{oscar_encoder_forward.1} parent=1 // pred_check_branch
      %24 = sbr.rel (0) target = $region13
    $region12: #{oscar_encoder_forward.1} parent=1 // pred_region
      _
    $region13: #{oscar_encoder_forward.1} parent=1 // pred_fallthru
      _
    // Predicated region
    $region14: #{oscar_encoder_forward.1} parent=1 // pred_check
      _
    $region15: #{oscar_encoder_forward.1} parent=1 // pred_check_branch
      %26 = sbr.rel (0) target = $region17
    $region16: #{oscar_encoder_forward.1} parent=1 // pred_region
      _
    $region17: #{oscar_encoder_forward.1} parent=1 // pred_fallthru
      _
    // Predicated region
    $region18: #{oscar_encoder_forward.1} parent=1 // pred_check
      _
    $region19: #{oscar_encoder_forward.1} parent=1 // pred_check_branch
      %28 = sbr.rel (0) target = $region21
    $region20: #{oscar_encoder_forward.1} parent=1 // pred_region
      _
    $region21: #{oscar_encoder_forward.1} parent=1 // pred_fallthru
      _
    // Predicated region
    $region22: #{oscar_encoder_forward.1} parent=1 // pred_check
      _
    $region23: #{oscar_encoder_forward.1} parent=1 // pred_check_branch
      %30 = sbr.rel (0) target = $region25
    $region24: #{oscar_encoder_forward.1} parent=1 // pred_region
      _
    $region25: #{oscar_encoder_forward.1} parent=1 // pred_fallthru
      _
    // Predicated region
    $region26: #{oscar_encoder_forward.1} parent=1 // pred_check
      _
    $region27: #{oscar_encoder_forward.1} parent=1 // pred_check_branch
      %32 = sbr.rel (0) target = $region29
    $region28: #{oscar_encoder_forward.1} parent=1 // pred_region
      _
    $region29: #{oscar_encoder_forward.1} parent=1 // pred_fallthru
      _
    // Predicated region
    $region30: #{oscar_encoder_forward.1} parent=1 // pred_check
      _
    $region31: #{oscar_encoder_forward.1} parent=1 // pred_check_branch
      %34 = sbr.rel (0) target = $region33
    $region32: #{oscar_encoder_forward.1} parent=1 // pred_region
      _
    $region33: #{oscar_encoder_forward.1} parent=1 // pred_fallthru
      _
    // Predicated region
    $region34: #{oscar_encoder_forward.1} parent=1 // pred_check
      _
    $region35: #{oscar_encoder_forward.1} parent=1 // pred_check_branch
      %36 = sbr.rel (0) target = $region37
    $region36: #{oscar_encoder_forward.1} parent=1 // pred_region
      _
    $region37: #{oscar_encoder_forward.1} parent=1 // pred_fallthru
      _
    %v37 = vld [vmem:[%s0] sm:$0xff]
    %v38 = vld [vmem:[%s0 + $0x8] sm:$0xff]
    %v39 = vld [vmem:[%s0 + $0x10] sm:$0xff]
    %v40 = vld [vmem:[%s0 + $0x18] sm:$0xff]
    %v41 = vld [vmem:[%s0 + $0x20] sm:$0xff]
    %v42 = vld [vmem:[%s0 + $0x28] sm:$0xff]
    %v43 = vld [vmem:[%s0 + $0x30] sm:$0xff]
    %v44 = vld [vmem:[%s0 + $0x38] sm:$0xff]
    %v45 = vld [vmem:[%s0 + $0x40] sm:$0xff]
    %v46 = vld [vmem:[%s0 + $0x48] sm:$0xff]
    %v47 = vld [vmem:[%s0 + $0x50] sm:$0xff]
    %v48 = vld [vmem:[%s0 + $0x58] sm:$0xff]
    %v49 = vld [vmem:[%s2] sm:$0xff]
    %v50 = vld [vmem:[%s2 + $0x8] sm:$0xff]
    %v51 = vld [vmem:[%s2 + $0x10] sm:$0xff]
    %v52 = vld [vmem:[%s2 + $0x18] sm:$0xff]
    %v53 = vld [vmem:[%s2 + $0x20] sm:$0xff]
    %v54 = vld [vmem:[%s2 + $0x28] sm:$0xff]
    %v55 = vld [vmem:[%s2 + $0x30] sm:$0xff]
    %v56 = vld [vmem:[%s2 + $0x38] sm:$0xff]
    %v57 = vld [vmem:[%s2 + $0x40] sm:$0xff]
    %v58 = vld [vmem:[%s2 + $0x48] sm:$0xff]
    %v59 = vld [vmem:[%s2 + $0x50] sm:$0xff]
    %v60 = vld [vmem:[%s2 + $0x58] sm:$0xff]
    %v61 = vld [vmem:[%s2 + $0x60] sm:$0xff]
    %v62 = vld [vmem:[%s2 + $0x68] sm:$0xff]
    %v63 = vld [vmem:[%s2 + $0x70] sm:$0xff]
    %v64 = vld [vmem:[%s2 + $0x78] sm:$0xff]
    %v65 = vld [vmem:[%s2 + $0x80] sm:$0xff]
    %v66 = vld [vmem:[%s2 + $0x88] sm:$0xff]
    %v67 = vld [vmem:[%s2 + $0x90] sm:$0xff]
    %v68 = vld [vmem:[%s2 + $0x98] sm:$0xff]
    %v69 = vld [vmem:[%s2 + $0xa0] sm:$0xff]
    %v70 = vld [vmem:[%s2 + $0xa8] sm:$0xff]
    %v71 = vld [vmem:[%s2 + $0xb0] sm:$0xff]
    %v72 = vld [vmem:[%s2 + $0xb8] sm:$0xff]
    %v73 = vld [vmem:[%s2 + $0xc0] sm:$0xff]
    %v74 = vld [vmem:[%s2 + $0xc8] sm:$0xff]
    %v75 = vld [vmem:[%s2 + $0xd0] sm:$0xff]
    %v76 = vld [vmem:[%s2 + $0xd8] sm:$0xff]
    %v77 = vld [vmem:[%s2 + $0xe0] sm:$0xff]
    %v78 = vld [vmem:[%s2 + $0xe8] sm:$0xff]
    %v79 = vld [vmem:[%s2 + $0xf0] sm:$0xff]
    %v80 = vld [vmem:[%s2 + $0xf8] sm:$0xff]
    %v81 = vld [vmem:[%s2 + $0x100] sm:$0xff]
    %v82 = vld [vmem:[%s2 + $0x108] sm:$0xff]
    %v83 = vld [vmem:[%s2 + $0x110] sm:$0xff]
    %v84 = vld [vmem:[%s2 + $0x118] sm:$0xff]
    %v85 = vld [vmem:[%s2 + $0x120] sm:$0xff]
    %v86 = vld [vmem:[%s2 + $0x128] sm:$0xff]
    %v87 = vld [vmem:[%s2 + $0x130] sm:$0xff]
    %v88 = vld [vmem:[%s2 + $0x138] sm:$0xff]
    %v89 = vld [vmem:[%s2 + $0x140] sm:$0xff]
    %v90 = vld [vmem:[%s2 + $0x148] sm:$0xff]
    %v91 = vld [vmem:[%s2 + $0x150] sm:$0xff]
    %v92 = vld [vmem:[%s2 + $0x158] sm:$0xff]
    %v93 = vld [vmem:[%s2 + $0x160] sm:$0xff]
    %v94 = vld [vmem:[%s2 + $0x168] sm:$0xff]
    %v95 = vld [vmem:[%s2 + $0x170] sm:$0xff]
    %v96 = vld [vmem:[%s2 + $0x178] sm:$0xff]
    %v97 = vld [vmem:[%s2 + $0x180] sm:$0xff]
    %v98 = vld [vmem:[%s2 + $0x188] sm:$0xff]
    %v99 = vld [vmem:[%s2 + $0x190] sm:$0xff]
    %v100 = vld [vmem:[%s2 + $0x198] sm:$0xff]
    %v101 = vld [vmem:[%s2 + $0x1a0] sm:$0xff]
    %v102 = vld [vmem:[%s2 + $0x1a8] sm:$0xff]
    %v103 = vld [vmem:[%s2 + $0x1b0] sm:$0xff]
    %v104 = vld [vmem:[%s2 + $0x1b8] sm:$0xff]
    %v105 = vld [vmem:[%s2 + $0x1c0] sm:$0xff]
    %v106 = vld [vmem:[%s2 + $0x1c8] sm:$0xff]
    %v107 = vld [vmem:[%s2 + $0x1d0] sm:$0xff]
    %v108 = vld [vmem:[%s2 + $0x1d8] sm:$0xff]
    %v109 = vld [vmem:[%s2 + $0x1e0] sm:$0xff]
    %v110 = vld [vmem:[%s2 + $0x1e8] sm:$0xff]
    %v111 = vld [vmem:[%s2 + $0x1f0] sm:$0xff]
    %v112 = vld [vmem:[%s2 + $0x1f8] sm:$0xff]
    %v113 = vld [vmem:[%s2 + $0x200] sm:$0xff]
    %v114 = vld [vmem:[%s2 + $0x208] sm:$0xff]
    %v115 = vld [vmem:[%s2 + $0x210] sm:$0xff]
    %v116 = vld [vmem:[%s2 + $0x218] sm:$0xff]
    %v117 = vld [vmem:[%s2 + $0x220] sm:$0xff]
    %v118 = vld [vmem:[%s2 + $0x228] sm:$0xff]
    %v119 = vld [vmem:[%s2 + $0x230] sm:$0xff]
    %v120 = vld [vmem:[%s2 + $0x238] sm:$0xff]
    %v121 = vld [vmem:[%s2 + $0x240] sm:$0xff]
    %v122 = vld [vmem:[%s2 + $0x248] sm:$0xff]
    %v123 = vld [vmem:[%s2 + $0x250] sm:$0xff]
    %v124 = vld [vmem:[%s2 + $0x258] sm:$0xff]
    %v125 = vld [vmem:[%s2 + $0x260] sm:$0xff]
    %v126 = vld [vmem:[%s2 + $0x268] sm:$0xff]
    %v127 = vld [vmem:[%s2 + $0x270] sm:$0xff]
    %v128 = vld [vmem:[%s2 + $0x278] sm:$0xff]
    %v129 = vld [vmem:[%s2 + $0x280] sm:$0xff]
    %v130 = vld [vmem:[%s2 + $0x288] sm:$0xff]
    %v131 = vld [vmem:[%s2 + $0x290] sm:$0xff]
    %v132 = vld [vmem:[%s2 + $0x298] sm:$0xff]
    %v133 = vld [vmem:[%s2 + $0x2a0] sm:$0xff]
    %v134 = vld [vmem:[%s2 + $0x2a8] sm:$0xff]
    %v135 = vld [vmem:[%s2 + $0x2b0] sm:$0xff]
    %v136 = vld [vmem:[%s2 + $0x2b8] sm:$0xff]
    %v137 = vld [vmem:[%s2 + $0x2c0] sm:$0xff]
    %v138 = vld [vmem:[%s2 + $0x2c8] sm:$0xff]
    %v139 = vld [vmem:[%s2 + $0x2d0] sm:$0xff]
    %v140 = vld [vmem:[%s2 + $0x2d8] sm:$0xff]
    %v141 = vld [vmem:[%s2 + $0x2e0] sm:$0xff]
    %v142 = vld [vmem:[%s2 + $0x2e8] sm:$0xff]
    %v143 = vld [vmem:[%s2 + $0x2f0] sm:$0xff]
    %v144 = vld [vmem:[%s2 + $0x2f8] sm:$0xff]
    %v145 = vld [vmem:[%s4] sm:$0x1]
    %v147 = vlaneseq
    %v148 = vshrl.u32 %v147, 7
    %v149 = vsub.s32 0, %v148
    %v150 = vrot.slane %v145, %v149
    %152 = vmatprep.subr.mxu0 0.0
    %153 = vmatpush1.msra.mxu0 %v49
    %154 = vmatprep.subr.mxu0 0.0
    %155 = vmatpush1.msra.mxu0 %v50
    %156 = vmatprep.subr.mxu0 0.0
    %157 = vmatpush1.msra.mxu0 %v51
    %158 = vmatprep.subr.mxu0 0.0
    %159 = vmatpush1.msra.mxu0 %v52
    %160 = vmatprep.subr.mxu0 0.0
    %161 = vmatpush1.msra.mxu0 %v53
    %162 = vmatprep.subr.mxu0 0.0
    %163 = vmatpush1.msra.mxu0 %v54
    %164 = vmatprep.subr.mxu0 0.0
    %165 = vmatpush1.msra.mxu0 %v55
    %166 = vmatprep.subr.mxu0 0.0
    %167 = vmatpush1.msra.mxu0 %v56
    %168 = vmatprep.subr.mxu0 0.0
    %169 = vmatpush1.msra.mxu0 %v57
    %170 = vmatprep.subr.mxu0 0.0
    %171 = vmatpush1.msra.mxu0 %v58
    %172 = vmatprep.subr.mxu0 0.0
    %173 = vmatpush1.msra.mxu0 %v59
    %174 = vmatprep.subr.mxu0 0.0
    %175 = vmatpush1.msra.mxu0 %v60
    %176 = vmatprep.subr.mxu0 0.0
    %177 = vmatpush1.msra.mxu0 %v61
    %178 = vmatprep.subr.mxu0 0.0
    %179 = vmatpush1.msra.mxu0 %v62
    %180 = vmatprep.subr.mxu0 0.0
    %181 = vmatpush1.msra.mxu0 %v63
    %182 = vmatprep.subr.mxu0 0.0
    %183 = vmatpush1.msra.mxu0 %v64
    %184 = vmatprep.subr.mxu0 0.0
    %185 = vmatpush1.msra.mxu0 %v65
    %186 = vmatprep.subr.mxu0 0.0
    %187 = vmatpush1.msra.mxu0 %v66
    %188 = vmatprep.subr.mxu0 0.0
    %189 = vmatpush1.msra.mxu0 %v67
    %190 = vmatprep.subr.mxu0 0.0
    %191 = vmatpush1.msra.mxu0 %v68
    %192 = vmatprep.subr.mxu0 0.0
    %193 = vmatpush1.msra.mxu0 %v69
    %194 = vmatprep.subr.mxu0 0.0
    %195 = vmatpush1.msra.mxu0 %v70
    %196 = vmatprep.subr.mxu0 0.0
    %197 = vmatpush1.msra.mxu0 %v71
    %198 = vmatprep.subr.mxu0 0.0
    %199 = vmatpush1.msra.mxu0 %v72
    %200 = vmatprep.subr.mxu0 0.0
    %201 = vmatpush1.msra.mxu0 %v73
    %202 = vmatprep.subr.mxu0 0.0
    %203 = vmatpush1.msra.mxu0 %v74
    %204 = vmatprep.subr.mxu0 0.0
    %205 = vmatpush1.msra.mxu0 %v75
    %206 = vmatprep.subr.mxu0 0.0
    %207 = vmatpush1.msra.mxu0 %v76
    %208 = vmatprep.subr.mxu0 0.0
    %209 = vmatpush1.msra.mxu0 %v77
    %210 = vmatprep.subr.mxu0 0.0
    %211 = vmatpush1.msra.mxu0 %v78
    %212 = vmatprep.subr.mxu0 0.0
    %213 = vmatpush1.msra.mxu0 %v79
    %214 = vmatprep.subr.mxu0 0.0
    %215 = vmatpush1.msra.mxu0 %v80
    %216 = vmatprep.mubr.f32.mxu0 %v38
    %217 = vmatmul.mubr.f32.gmra.mrb[0].mxu0 %v37
    %v218 = vpop.f32.mrb[0].mxu0
    %v219 = vadd.f32 %v150, %v218
    %v220 = vpop.f32.mrb[0].mxu0
    %221 = vmatprep.mubr.f32.mxu0 %v44
    %222 = vmatmul.mubr.f32.gmra.mrb[0].mxu0 %v43
    %v223 = vpop.f32.mrb[0].mxu0
    %v224 = vadd.f32 %v150, %v223
    %v225 = vpop.f32.mrb[0].mxu0
    %226 = vdwg.mxu0
    %227 = vmatprep.subr.mxu0 0.0
    %228 = vmatpush1.msra.mxu0 %v81
    %229 = vmatprep.subr.mxu0 0.0
    %230 = vmatpush1.msra.mxu0 %v82
    %231 = vmatprep.subr.mxu0 0.0
    %232 = vmatpush1.msra.mxu0 %v83
    %233 = vmatprep.subr.mxu0 0.0
    %234 = vmatpush1.msra.mxu0 %v84
    %235 = vmatprep.subr.mxu0 0.0
    %236 = vmatpush1.msra.mxu0 %v85
    %237 = vmatprep.subr.mxu0 0.0
    %238 = vmatpush1.msra.mxu0 %v86
    %239 = vmatprep.subr.mxu0 0.0
    %240 = vmatpush1.msra.mxu0 %v87
    %241 = vmatprep.subr.mxu0 0.0
    %242 = vmatpush1.msra.mxu0 %v88
    %243 = vmatprep.subr.mxu0 0.0
    %244 = vmatpush1.msra.mxu0 %v89
    %245 = vmatprep.subr.mxu0 0.0
    %246 = vmatpush1.msra.mxu0 %v90
    %247 = vmatprep.subr.mxu0 0.0
    %248 = vmatpush1.msra.mxu0 %v91
    %249 = vmatprep.subr.mxu0 0.0
    %250 = vmatpush1.msra.mxu0 %v92
    %251 = vmatprep.subr.mxu0 0.0
    %252 = vmatpush1.msra.mxu0 %v93
    %253 = vmatprep.subr.mxu0 0.0
    %254 = vmatpush1.msra.mxu0 %v94
    %255 = vmatprep.subr.mxu0 0.0
    %256 = vmatpush1.msra.mxu0 %v95
    %257 = vmatprep.subr.mxu0 0.0
    %258 = vmatpush1.msra.mxu0 %v96
    %259 = vmatprep.subr.mxu0 0.0
    %260 = vmatpush1.msra.mxu0 %v97
    %261 = vmatprep.subr.mxu0 0.0
    %262 = vmatpush1.msra.mxu0 %v98
    %263 = vmatprep.subr.mxu0 0.0
    %264 = vmatpush1.msra.mxu0 %v99
    %265 = vmatprep.subr.mxu0 0.0
    %266 = vmatpush1.msra.mxu0 %v100
    %267 = vmatprep.subr.mxu0 0.0
    %268 = vmatpush1.msra.mxu0 %v101
    %269 = vmatprep.subr.mxu0 0.0
    %270 = vmatpush1.msra.mxu0 %v102
    %271 = vmatprep.subr.mxu0 0.0
    %272 = vmatpush1.msra.mxu0 %v103
    %273 = vmatprep.subr.mxu0 0.0
    %274 = vmatpush1.msra.mxu0 %v104
    %275 = vmatprep.subr.mxu0 0.0
    %276 = vmatpush1.msra.mxu0 %v105
    %277 = vmatprep.subr.mxu0 0.0
    %278 = vmatpush1.msra.mxu0 %v106
    %279 = vmatprep.subr.mxu0 0.0
    %280 = vmatpush1.msra.mxu0 %v107
    %281 = vmatprep.subr.mxu0 0.0
    %282 = vmatpush1.msra.mxu0 %v108
    %283 = vmatprep.subr.mxu0 0.0
    %284 = vmatpush1.msra.mxu0 %v109
    %285 = vmatprep.subr.mxu0 0.0
    %286 = vmatpush1.msra.mxu0 %v110
    %287 = vmatprep.subr.mxu0 0.0
    %288 = vmatpush1.msra.mxu0 %v111
    %289 = vmatprep.subr.mxu0 0.0
    %290 = vmatpush1.msra.mxu0 %v112
    %291 = vmatprep.mubr.f32.mxu0 %v40
    %292 = vmatmul.mubr.f32.gmra.mrb[0].mxu0 %v39
    %v293 = vpop.f32.mrb[0].mxu0
    %v294 = vadd.f32 %v219, %v293
    %v295 = vpop.f32.mrb[0].mxu0
    %296 = vmatprep.mubr.f32.mxu0 %v46
    %297 = vmatmul.mubr.f32.gmra.mrb[0].mxu0 %v45
    %v298 = vpop.f32.mrb[0].mxu0
    %v299 = vadd.f32 %v224, %v298
    %v300 = vpop.f32.mrb[0].mxu0
    %301 = vdwg.mxu0
    %302 = vmatprep.subr.mxu0 0.0
    %303 = vmatpush1.msra.mxu0 %v113
    %304 = vmatprep.subr.mxu0 0.0
    %305 = vmatpush1.msra.mxu0 %v114
    %306 = vmatprep.subr.mxu0 0.0
    %307 = vmatpush1.msra.mxu0 %v115
    %308 = vmatprep.subr.mxu0 0.0
    %309 = vmatpush1.msra.mxu0 %v116
    %310 = vmatprep.subr.mxu0 0.0
    %311 = vmatpush1.msra.mxu0 %v117
    %312 = vmatprep.subr.mxu0 0.0
    %313 = vmatpush1.msra.mxu0 %v118
    %314 = vmatprep.subr.mxu0 0.0
    %315 = vmatpush1.msra.mxu0 %v119
    %316 = vmatprep.subr.mxu0 0.0
    %317 = vmatpush1.msra.mxu0 %v120
    %318 = vmatprep.subr.mxu0 0.0
    %319 = vmatpush1.msra.mxu0 %v121
    %320 = vmatprep.subr.mxu0 0.0
    %321 = vmatpush1.msra.mxu0 %v122
    %322 = vmatprep.subr.mxu0 0.0
    %323 = vmatpush1.msra.mxu0 %v123
    %324 = vmatprep.subr.mxu0 0.0
    %325 = vmatpush1.msra.mxu0 %v124
    %326 = vmatprep.subr.mxu0 0.0
    %327 = vmatpush1.msra.mxu0 %v125
    %328 = vmatprep.subr.mxu0 0.0
    %329 = vmatpush1.msra.mxu0 %v126
    %330 = vmatprep.subr.mxu0 0.0
    %331 = vmatpush1.msra.mxu0 %v127
    %332 = vmatprep.subr.mxu0 0.0
    %333 = vmatpush1.msra.mxu0 %v128
    %334 = vmatprep.subr.mxu0 0.0
    %335 = vmatpush1.msra.mxu0 %v129
    %336 = vmatprep.subr.mxu0 0.0
    %337 = vmatpush1.msra.mxu0 %v130
    %338 = vmatprep.subr.mxu0 0.0
    %339 = vmatpush1.msra.mxu0 %v131
    %340 = vmatprep.subr.mxu0 0.0
    %341 = vmatpush1.msra.mxu0 %v132
    %342 = vmatprep.subr.mxu0 0.0
    %343 = vmatpush1.msra.mxu0 %v133
    %344 = vmatprep.subr.mxu0 0.0
    %345 = vmatpush1.msra.mxu0 %v134
    %346 = vmatprep.subr.mxu0 0.0
    %347 = vmatpush1.msra.mxu0 %v135
    %348 = vmatprep.subr.mxu0 0.0
    %349 = vmatpush1.msra.mxu0 %v136
    %350 = vmatprep.subr.mxu0 0.0
    %351 = vmatpush1.msra.mxu0 %v137
    %352 = vmatprep.subr.mxu0 0.0
    %353 = vmatpush1.msra.mxu0 %v138
    %354 = vmatprep.subr.mxu0 0.0
    %355 = vmatpush1.msra.mxu0 %v139
    %356 = vmatprep.subr.mxu0 0.0
    %357 = vmatpush1.msra.mxu0 %v140
    %358 = vmatprep.subr.mxu0 0.0
    %359 = vmatpush1.msra.mxu0 %v141
    %360 = vmatprep.subr.mxu0 0.0
    %361 = vmatpush1.msra.mxu0 %v142
    %362 = vmatprep.subr.mxu0 0.0
    %363 = vmatpush1.msra.mxu0 %v143
    %364 = vmatprep.subr.mxu0 0.0
    %365 = vmatpush1.msra.mxu0 %v144
    %366 = vmatprep.mubr.f32.mxu0 %v42
    %367 = vmatmul.mubr.f32.gmra.mrb[0].mxu0 %v41
    %v368 = vpop.f32.mrb[0].mxu0
    %v369 = vadd.f32 %v294, %v368
    %v370 = vpop.f32.mrb[0].mxu0
    %371 = vmatprep.mubr.f32.mxu0 %v48
    %372 = vmatmul.mubr.f32.gmra.mrb[0].mxu0 %v47
    %v373 = vpop.f32.mrb[0].mxu0
    %v374 = vadd.f32 %v299, %v373
    %v375 = vpop.f32.mrb[0].mxu0
    %376 = vdwg.mxu0
    %v377 = vld [vmem:[%s3] sm:$0xff]
    %v378 = vld [vmem:[%s3 + $0x8] sm:$0xff]
    %v379 = vld [vmem:[%s3 + $0x10] sm:$0xff]
    %v380 = vld [vmem:[%s3 + $0x18] sm:$0xff]
    %vm381 = vcmask 261120
    %v383 = vsel %vm381, 0.0, 0
    %385 = vmatprep.subr.mxu0 0.0
    %386 = vmatpush1.msra.mxu0 %v377
    %387 = vmatprep.subr.mxu0 0.0
    %388 = vmatpush1.msra.mxu0 %v378
    %389 = vmatprep.subr.mxu0 0.0
    %390 = vmatpush1.msra.mxu0 %v379
    %391 = vmatprep.subr.mxu0 0.0
    %392 = vmatpush1.msra.mxu0 %v380
    %393 = vmatprep.subr.mxu0 0.0
    %394 = vmatpush1.msra.mxu0 0.0
    %395 = vmatprep.subr.mxu0 0.0
    %396 = vmatpush1.msra.mxu0 0.0
    %397 = vmatprep.subr.mxu0 0.0
    %398 = vmatpush1.msra.mxu0 0.0
    %399 = vmatprep.subr.mxu0 0.0
    %400 = vmatpush1.msra.mxu0 0.0
    %401 = vmatprep.subr.mxu0 0.0
    %402 = vmatpush1.msra.mxu0 0.0
    %403 = vmatprep.subr.mxu0 0.0
    %404 = vmatpush1.msra.mxu0 0.0
    %405 = vmatprep.subr.mxu0 0.0
    %406 = vmatpush1.msra.mxu0 0.0
    %407 = vmatprep.subr.mxu0 0.0
    %408 = vmatpush1.msra.mxu0 0.0
    %409 = vmatprep.subr.mxu0 0.0
    %410 = vmatpush1.msra.mxu0 0.0
    %411 = vmatprep.subr.mxu0 0.0
    %412 = vmatpush1.msra.mxu0 0.0
    %413 = vmatprep.subr.mxu0 0.0
    %414 = vmatpush1.msra.mxu0 0.0
    %415 = vmatprep.subr.mxu0 0.0
    %416 = vmatpush1.msra.mxu0 0.0
    %417 = vmatprep.subr.mxu0 0.0
    %418 = vmatpush1.msra.mxu0 0.0
    %419 = vmatprep.subr.mxu0 0.0
    %420 = vmatpush1.msra.mxu0 0.0
    %421 = vmatprep.subr.mxu0 0.0
    %422 = vmatpush1.msra.mxu0 0.0
    %423 = vmatprep.subr.mxu0 0.0
    %424 = vmatpush1.msra.mxu0 0.0
    %425 = vmatprep.subr.mxu0 0.0
    %426 = vmatpush1.msra.mxu0 0.0
    %427 = vmatprep.subr.mxu0 0.0
    %428 = vmatpush1.msra.mxu0 0.0
    %429 = vmatprep.subr.mxu0 0.0
    %430 = vmatpush1.msra.mxu0 0.0
    %431 = vmatprep.subr.mxu0 0.0
    %432 = vmatpush1.msra.mxu0 0.0
    %433 = vmatprep.subr.mxu0 0.0
    %434 = vmatpush1.msra.mxu0 0.0
    %435 = vmatprep.subr.mxu0 0.0
    %436 = vmatpush1.msra.mxu0 0.0
    %437 = vmatprep.subr.mxu0 0.0
    %438 = vmatpush1.msra.mxu0 0.0
    %439 = vmatprep.subr.mxu0 0.0
    %440 = vmatpush1.msra.mxu0 0.0
    %441 = vmatprep.subr.mxu0 0.0
    %442 = vmatpush1.msra.mxu0 0.0
    %443 = vmatprep.subr.mxu0 0.0
    %444 = vmatpush1.msra.mxu0 0.0
    %445 = vmatprep.subr.mxu0 0.0
    %446 = vmatpush1.msra.mxu0 0.0
    %447 = vmatprep.subr.mxu0 0.0
    %448 = vmatpush1.msra.mxu0 0.0
    %449 = vmatprep.mubr.f32.mxu0 0.0
    %450 = vmatmul.mubr.f32.gmra.mrb[0].mxu0 %v383
    %v451 = vpop.f32.mrb[0].mxu0
    %v452 = vadd.f32 0.0, %v451
    %v453 = vpop.f32.mrb[0].mxu0
    %454 = vdwg.mxu0
    %v455 = vadd.f32 %v369, %v452
    %v456 = vxor.u32 %v455, 2147483648
    %v457 = vmul.f32 %v456, 1.442695
    %v458 = vpow.pop %v457
    %v459 = vadd.f32 %v458, 1.0
    %v460 = vrcp.pop %v459
    %v461 = vmul.f32 1.0, %v460
    %v462 = vtanh.pop %v455
    %v463 = vmul.f32 %v461, 0.0
    %465 = vrot.lane.b32.xlu0 %v462, 64
    %v466 = vpop.permute.xlu0 %465
    %v468 = vmul.f32 %v461, %v466
    %470 = vrot.lane.b32.xlu0 %v468, 32
    %v471 = vpop.permute.xlu0 %470
    %v473 = vadd.f32 %v463, %v471
    %v474 = vtanh.pop %v473
    %476 = vrot.lane.b32.xlu0 %v474, 64
    %v477 = vpop.permute.xlu0 %476
    %v479 = vmul.f32 %v461, %v477
    %v480 = vld [vmem:[%s1] sm:$0x3]
    %v481 = vsub.f32 1.0, %v480
    %483 = vset.pattern.permute.xlu0 0
    %484 = vperm.xlu0 %483, %v480
    %v485 = vpop.permute.xlu0 %484
    %v487 = vmul.f32 %v485, %v479
    %489 = vset.pattern.permute.xlu0 0
    %490 = vperm.xlu0 %489, %v481
    %v491 = vpop.permute.xlu0 %490
    %v493 = vmul.f32 %v491, 0.0
    %v494 = vadd.f32 %v487, %v493
    %v495 = vmul.f32 %v485, %v473
    %v496 = vadd.f32 %v495, %v493
    %498 = vrot.lane.b32.xlu0 %v487, 32
    %v499 = vpop.permute.xlu0 %498
    %vm501 = vcmask 254976
    %502 = vst.msk [vmem:[%s9] sm:$0x3] %vm501, %v499
    %504 = vrot.lane.b32.xlu0 %v494, 32
    %v505 = vpop.permute.xlu0 %504
    %v506 = vsel %vm381, %v505, 0
    %508 = vmatprep.subr.mxu0 0.0
    %509 = vmatpush1.msra.mxu0 %v377
    %510 = vmatprep.subr.mxu0 0.0
    %511 = vmatpush1.msra.mxu0 %v378
    %512 = vmatprep.subr.mxu0 0.0
    %513 = vmatpush1.msra.mxu0 %v379
    %514 = vmatprep.subr.mxu0 0.0
    %515 = vmatpush1.msra.mxu0 %v380
    %516 = vmatprep.subr.mxu0 0.0
    %517 = vmatpush1.msra.mxu0 0.0
    %518 = vmatprep.subr.mxu0 0.0
    %519 = vmatpush1.msra.mxu0 0.0
    %520 = vmatprep.subr.mxu0 0.0
    %521 = vmatpush1.msra.mxu0 0.0
    %522 = vmatprep.subr.mxu0 0.0
    %523 = vmatpush1.msra.mxu0 0.0
    %524 = vmatprep.subr.mxu0 0.0
    %525 = vmatpush1.msra.mxu0 0.0
    %526 = vmatprep.subr.mxu0 0.0
    %527 = vmatpush1.msra.mxu0 0.0
    %528 = vmatprep.subr.mxu0 0.0
    %529 = vmatpush1.msra.mxu0 0.0
    %530 = vmatprep.subr.mxu0 0.0
    %531 = vmatpush1.msra.mxu0 0.0
    %532 = vmatprep.subr.mxu0 0.0
    %533 = vmatpush1.msra.mxu0 0.0
    %534 = vmatprep.subr.mxu0 0.0
    %535 = vmatpush1.msra.mxu0 0.0
    %536 = vmatprep.subr.mxu0 0.0
    %537 = vmatpush1.msra.mxu0 0.0
    %538 = vmatprep.subr.mxu0 0.0
    %539 = vmatpush1.msra.mxu0 0.0
    %540 = vmatprep.subr.mxu0 0.0
    %541 = vmatpush1.msra.mxu0 0.0
    %542 = vmatprep.subr.mxu0 0.0
    %543 = vmatpush1.msra.mxu0 0.0
    %544 = vmatprep.subr.mxu0 0.0
    %545 = vmatpush1.msra.mxu0 0.0
    %546 = vmatprep.subr.mxu0 0.0
    %547 = vmatpush1.msra.mxu0 0.0
    %548 = vmatprep.subr.mxu0 0.0
    %549 = vmatpush1.msra.mxu0 0.0
    %550 = vmatprep.subr.mxu0 0.0
    %551 = vmatpush1.msra.mxu0 0.0
    %552 = vmatprep.subr.mxu0 0.0
    %553 = vmatpush1.msra.mxu0 0.0
    %554 = vmatprep.subr.mxu0 0.0
    %555 = vmatpush1.msra.mxu0 0.0
    %556 = vmatprep.subr.mxu0 0.0
    %557 = vmatpush1.msra.mxu0 0.0
    %558 = vmatprep.subr.mxu0 0.0
    %559 = vmatpush1.msra.mxu0 0.0
    %560 = vmatprep.subr.mxu0 0.0
    %561 = vmatpush1.msra.mxu0 0.0
    %562 = vmatprep.subr.mxu0 0.0
    %563 = vmatpush1.msra.mxu0 0.0
    %564 = vmatprep.subr.mxu0 0.0
    %565 = vmatpush1.msra.mxu0 0.0
    %566 = vmatprep.subr.mxu0 0.0
    %567 = vmatpush1.msra.mxu0 0.0
    %568 = vmatprep.subr.mxu0 0.0
    %569 = vmatpush1.msra.mxu0 0.0
    %570 = vmatprep.subr.mxu0 0.0
    %571 = vmatpush1.msra.mxu0 0.0
    %572 = vmatprep.mubr.f32.mxu0 0.0
    %573 = vmatmul.mubr.f32.gmra.mrb[0].mxu0 %v506
    %v574 = vpop.f32.mrb[0].mxu0
    %v575 = vadd.f32 0.0, %v574
    %v576 = vpop.f32.mrb[0].mxu0
    %577 = vdwg.mxu0
    %v579 = vrot.slane %v575, 6
    %v581 = vadd.f32 %v369, %v579
    %v582 = vxor.u32 %v581, 2147483648
    %v583 = vmul.f32 %v582, 1.442695
    %v584 = vpow.pop %v583
    %v585 = vadd.f32 %v584, 1.0
    %v586 = vrcp.pop %v585
    %v587 = vmul.f32 1.0, %v586
    %v588 = vtanh.pop %v581
    %v590 = vrot.slane %v496, 6
    %v592 = vmul.f32 %v587, %v590
    %594 = vrot.lane.b32.xlu0 %v588, 64
    %v595 = vpop.permute.xlu0 %594
    %v597 = vmul.f32 %v587, %v595
    %599 = vrot.lane.b32.xlu0 %v597, 32
    %v600 = vpop.permute.xlu0 %599
    %v602 = vadd.f32 %v592, %v600
    %v603 = vtanh.pop %v602
    %605 = vrot.lane.b32.xlu0 %v603, 64
    %v606 = vpop.permute.xlu0 %605
    %v608 = vmul.f32 %v587, %v606
    %s609 = scalar_lea.vmem %s1, 2
    %v610 = vld [vmem:[%s609] sm:$0x3]
    %v611 = vsub.f32 1.0, %v610
    %613 = vset.pattern.permute.xlu0 0
    %614 = vperm.xlu0 %613, %v610
    %v615 = vpop.permute.xlu0 %614
    %v618 = vrot.slane %v608, 2
    %619 = vrot.lane.b32.xlu0 %v618, 32
    %v620 = vpop.permute.xlu0 %619
    %v622 = vmul.f32 %v615, %v620
    %624 = vset.pattern.permute.xlu0 0
    %625 = vperm.xlu0 %624, %v611
    %v626 = vpop.permute.xlu0 %625
    %v628 = vmul.f32 %v626, %v494
    %630 = vrot.lane.b32.xlu0 %v628, 32
    %v631 = vpop.permute.xlu0 %630
    %v633 = vadd.f32 %v622, %v631
    %v635 = vrot.slane %v602, 2
    %636 = vrot.lane.b32.xlu0 %v635, 96
    %v637 = vpop.permute.xlu0 %636
    %v639 = vmul.f32 %v615, %v637
    %v640 = vmul.f32 %v626, %v496
    %642 = vrot.lane.b32.xlu0 %v640, 96
    %v643 = vpop.permute.xlu0 %642
    %v645 = vadd.f32 %v639, %v643
    %s646 = scalar_lea.vmem %s9, 2
    %647 = vst.msk [vmem:[%s646] sm:$0x3] %vm501, %v622
    %v649 = vsel %vm381, %v633, 0
    %651 = vmatprep.subr.mxu0 0.0
    %652 = vmatpush1.msra.mxu0 %v377
    %653 = vmatprep.subr.mxu0 0.0
    %654 = vmatpush1.msra.mxu0 %v378
    %655 = vmatprep.subr.mxu0 0.0
    %656 = vmatpush1.msra.mxu0 %v379
    %657 = vmatprep.subr.mxu0 0.0
    %658 = vmatpush1.msra.mxu0 %v380
    %659 = vmatprep.subr.mxu0 0.0
    %660 = vmatpush1.msra.mxu0 0.0
    %661 = vmatprep.subr.mxu0 0.0
    %662 = vmatpush1.msra.mxu0 0.0
    %663 = vmatprep.subr.mxu0 0.0
    %664 = vmatpush1.msra.mxu0 0.0
    %665 = vmatprep.subr.mxu0 0.0
    %666 = vmatpush1.msra.mxu0 0.0
    %667 = vmatprep.subr.mxu0 0.0
    %668 = vmatpush1.msra.mxu0 0.0
    %669 = vmatprep.subr.mxu0 0.0
    %670 = vmatpush1.msra.mxu0 0.0
    %671 = vmatprep.subr.mxu0 0.0
    %672 = vmatpush1.msra.mxu0 0.0
    %673 = vmatprep.subr.mxu0 0.0
    %674 = vmatpush1.msra.mxu0 0.0
    %675 = vmatprep.subr.mxu0 0.0
    %676 = vmatpush1.msra.mxu0 0.0
    %677 = vmatprep.subr.mxu0 0.0
    %678 = vmatpush1.msra.mxu0 0.0
    %679 = vmatprep.subr.mxu0 0.0
    %680 = vmatpush1.msra.mxu0 0.0
    %681 = vmatprep.subr.mxu0 0.0
    %682 = vmatpush1.msra.mxu0 0.0
    %683 = vmatprep.subr.mxu0 0.0
    %684 = vmatpush1.msra.mxu0 0.0
    %685 = vmatprep.subr.mxu0 0.0
    %686 = vmatpush1.msra.mxu0 0.0
    %687 = vmatprep.subr.mxu0 0.0
    %688 = vmatpush1.msra.mxu0 0.0
    %689 = vmatprep.subr.mxu0 0.0
    %690 = vmatpush1.msra.mxu0 0.0
    %691 = vmatprep.subr.mxu0 0.0
    %692 = vmatpush1.msra.mxu0 0.0
    %693 = vmatprep.subr.mxu0 0.0
    %694 = vmatpush1.msra.mxu0 0.0
    %695 = vmatprep.subr.mxu0 0.0
    %696 = vmatpush1.msra.mxu0 0.0
    %697 = vmatprep.subr.mxu0 0.0
    %698 = vmatpush1.msra.mxu0 0.0
    %699 = vmatprep.subr.mxu0 0.0
    %700 = vmatpush1.msra.mxu0 0.0
    %701 = vmatprep.subr.mxu0 0.0
    %702 = vmatpush1.msra.mxu0 0.0
    %703 = vmatprep.subr.mxu0 0.0
    %704 = vmatpush1.msra.mxu0 0.0
    %705 = vmatprep.subr.mxu0 0.0
    %706 = vmatpush1.msra.mxu0 0.0
    %707 = vmatprep.subr.mxu0 0.0
    %708 = vmatpush1.msra.mxu0 0.0
    %709 = vmatprep.subr.mxu0 0.0
    %710 = vmatpush1.msra.mxu0 0.0
    %711 = vmatprep.subr.mxu0 0.0
    %712 = vmatpush1.msra.mxu0 0.0
    %713 = vmatprep.subr.mxu0 0.0
    %714 = vmatpush1.msra.mxu0 0.0
    %715 = vmatprep.mubr.f32.mxu0 0.0
    %716 = vmatmul.mubr.f32.gmra.mrb[0].mxu0 %v649
    %v717 = vpop.f32.mrb[0].mxu0
    %v718 = vadd.f32 0.0, %v717
    %v719 = vpop.f32.mrb[0].mxu0
    %720 = vdwg.mxu0
    %v722 = vrot.slane %v718, 4
    %v724 = vadd.f32 %v369, %v722
    %v725 = vxor.u32 %v724, 2147483648
    %v726 = vmul.f32 %v725, 1.442695
    %v727 = vpow.pop %v726
    %v728 = vadd.f32 %v727, 1.0
    %v729 = vrcp.pop %v728
    %v730 = vmul.f32 1.0, %v729
    %v731 = vtanh.pop %v724
    %v733 = vrot.slane %v645, 4
    %734 = vrot.lane.b32.xlu0 %v733, 32
    %v735 = vpop.permute.xlu0 %734
    %v737 = vmul.f32 %v730, %v735
    %739 = vrot.lane.b32.xlu0 %v731, 64
    %v740 = vpop.permute.xlu0 %739
    %v742 = vmul.f32 %v730, %v740
    %744 = vrot.lane.b32.xlu0 %v742, 32
    %v745 = vpop.permute.xlu0 %744
    %v747 = vadd.f32 %v737, %v745
    %v748 = vtanh.pop %v747
    %750 = vrot.lane.b32.xlu0 %v748, 64
    %v751 = vpop.permute.xlu0 %750
    %v753 = vmul.f32 %v730, %v751
    %s754 = scalar_lea.vmem %s1, 4
    %v755 = vld [vmem:[%s754] sm:$0x3]
    %v756 = vsub.f32 1.0, %v755
    %758 = vset.pattern.permute.xlu0 0
    %759 = vperm.xlu0 %758, %v755
    %v760 = vpop.permute.xlu0 %759
    %v763 = vrot.slane %v753, 4
    %764 = vrot.lane.b32.xlu0 %v763, 32
    %v765 = vpop.permute.xlu0 %764
    %v767 = vmul.f32 %v760, %v765
    %769 = vset.pattern.permute.xlu0 0
    %770 = vperm.xlu0 %769, %v756
    %v771 = vpop.permute.xlu0 %770
    %v773 = vmul.f32 %v771, %v633
    %v774 = vadd.f32 %v767, %v773
    %v776 = vrot.slane %v747, 4
    %777 = vrot.lane.b32.xlu0 %v776, 96
    %v778 = vpop.permute.xlu0 %777
    %v780 = vmul.f32 %v760, %v778
    %v781 = vmul.f32 %v771, %v645
    %v782 = vadd.f32 %v780, %v781
    %s783 = scalar_lea.vmem %s9, 4
    %784 = vst.msk [vmem:[%s783] sm:$0x3] %vm501, %v767
    %v786 = vsel %vm381, %v774, 0
    %788 = vmatprep.subr.mxu0 0.0
    %789 = vmatpush1.msra.mxu0 %v377
    %790 = vmatprep.subr.mxu0 0.0
    %791 = vmatpush1.msra.mxu0 %v378
    %792 = vmatprep.subr.mxu0 0.0
    %793 = vmatpush1.msra.mxu0 %v379
    %794 = vmatprep.subr.mxu0 0.0
    %795 = vmatpush1.msra.mxu0 %v380
    %796 = vmatprep.subr.mxu0 0.0
    %797 = vmatpush1.msra.mxu0 0.0
    %798 = vmatprep.subr.mxu0 0.0
    %799 = vmatpush1.msra.mxu0 0.0
    %800 = vmatprep.subr.mxu0 0.0
    %801 = vmatpush1.msra.mxu0 0.0
    %802 = vmatprep.subr.mxu0 0.0
    %803 = vmatpush1.msra.mxu0 0.0
    %804 = vmatprep.subr.mxu0 0.0
    %805 = vmatpush1.msra.mxu0 0.0
    %806 = vmatprep.subr.mxu0 0.0
    %807 = vmatpush1.msra.mxu0 0.0
    %808 = vmatprep.subr.mxu0 0.0
    %809 = vmatpush1.msra.mxu0 0.0
    %810 = vmatprep.subr.mxu0 0.0
    %811 = vmatpush1.msra.mxu0 0.0
    %812 = vmatprep.subr.mxu0 0.0
    %813 = vmatpush1.msra.mxu0 0.0
    %814 = vmatprep.subr.mxu0 0.0
    %815 = vmatpush1.msra.mxu0 0.0
    %816 = vmatprep.subr.mxu0 0.0
    %817 = vmatpush1.msra.mxu0 0.0
    %818 = vmatprep.subr.mxu0 0.0
    %819 = vmatpush1.msra.mxu0 0.0
    %820 = vmatprep.subr.mxu0 0.0
    %821 = vmatpush1.msra.mxu0 0.0
    %822 = vmatprep.subr.mxu0 0.0
    %823 = vmatpush1.msra.mxu0 0.0
    %824 = vmatprep.subr.mxu0 0.0
    %825 = vmatpush1.msra.mxu0 0.0
    %826 = vmatprep.subr.mxu0 0.0
    %827 = vmatpush1.msra.mxu0 0.0
    %828 = vmatprep.subr.mxu0 0.0
    %829 = vmatpush1.msra.mxu0 0.0
    %830 = vmatprep.subr.mxu0 0.0
    %831 = vmatpush1.msra.mxu0 0.0
    %832 = vmatprep.subr.mxu0 0.0
    %833 = vmatpush1.msra.mxu0 0.0
    %834 = vmatprep.subr.mxu0 0.0
    %835 = vmatpush1.msra.mxu0 0.0
    %836 = vmatprep.subr.mxu0 0.0
    %837 = vmatpush1.msra.mxu0 0.0
    %838 = vmatprep.subr.mxu0 0.0
    %839 = vmatpush1.msra.mxu0 0.0
    %840 = vmatprep.subr.mxu0 0.0
    %841 = vmatpush1.msra.mxu0 0.0
    %842 = vmatprep.subr.mxu0 0.0
    %843 = vmatpush1.msra.mxu0 0.0
    %844 = vmatprep.subr.mxu0 0.0
    %845 = vmatpush1.msra.mxu0 0.0
    %846 = vmatprep.subr.mxu0 0.0
    %847 = vmatpush1.msra.mxu0 0.0
    %848 = vmatprep.subr.mxu0 0.0
    %849 = vmatpush1.msra.mxu0 0.0
    %850 = vmatprep.subr.mxu0 0.0
    %851 = vmatpush1.msra.mxu0 0.0
    %852 = vmatprep.mubr.f32.mxu0 0.0
    %853 = vmatmul.mubr.f32.gmra.mrb[0].mxu0 %v786
    %v854 = vpop.f32.mrb[0].mxu0
    %v855 = vadd.f32 0.0, %v854
    %v856 = vpop.f32.mrb[0].mxu0
    %857 = vdwg.mxu0
    %v859 = vrot.slane %v855, 2
    %v861 = vadd.f32 %v369, %v859
    %v862 = vxor.u32 %v861, 2147483648
    %v863 = vmul.f32 %v862, 1.442695
    %v864 = vpow.pop %v863
    %v865 = vadd.f32 %v864, 1.0
    %v866 = vrcp.pop %v865
    %v867 = vmul.f32 1.0, %v866
    %v868 = vtanh.pop %v861
    %v870 = vrot.slane %v782, 2
    %871 = vrot.lane.b32.xlu0 %v870, 32
    %v872 = vpop.permute.xlu0 %871
    %v874 = vmul.f32 %v867, %v872
    %876 = vrot.lane.b32.xlu0 %v868, 64
    %v877 = vpop.permute.xlu0 %876
    %v879 = vmul.f32 %v867, %v877
    %881 = vrot.lane.b32.xlu0 %v879, 32
    %v882 = vpop.permute.xlu0 %881
    %v884 = vadd.f32 %v874, %v882
    %v885 = vtanh.pop %v884
    %887 = vrot.lane.b32.xlu0 %v885, 64
    %v888 = vpop.permute.xlu0 %887
    %v890 = vmul.f32 %v867, %v888
    %s891 = scalar_lea.vmem %s1, 6
    %v892 = vld [vmem:[%s891] sm:$0x3]
    %v893 = vsub.f32 1.0, %v892
    %895 = vset.pattern.permute.xlu0 0
    %896 = vperm.xlu0 %895, %v892
    %v897 = vpop.permute.xlu0 %896
    %v900 = vrot.slane %v890, 6
    %901 = vrot.lane.b32.xlu0 %v900, 32
    %v902 = vpop.permute.xlu0 %901
    %v904 = vmul.f32 %v897, %v902
    %906 = vset.pattern.permute.xlu0 0
    %907 = vperm.xlu0 %906, %v893
    %v908 = vpop.permute.xlu0 %907
    %v910 = vmul.f32 %v908, %v774
    %v911 = vadd.f32 %v904, %v910
    %v913 = vrot.slane %v884, 6
    %914 = vrot.lane.b32.xlu0 %v913, 96
    %v915 = vpop.permute.xlu0 %914
    %v917 = vmul.f32 %v897, %v915
    %v918 = vmul.f32 %v908, %v782
    %v919 = vadd.f32 %v917, %v918
    %s920 = scalar_lea.vmem %s9, 6
    %921 = vst.msk [vmem:[%s920] sm:$0x3] %vm501, %v904
    %v923 = vsel %vm381, %v911, 0
    %925 = vmatprep.subr.mxu0 0.0
    %926 = vmatpush1.msra.mxu0 %v377
    %927 = vmatprep.subr.mxu0 0.0
    %928 = vmatpush1.msra.mxu0 %v378
    %929 = vmatprep.subr.mxu0 0.0
    %930 = vmatpush1.msra.mxu0 %v379
    %931 = vmatprep.subr.mxu0 0.0
    %932 = vmatpush1.msra.mxu0 %v380
    %933 = vmatprep.subr.mxu0 0.0
    %934 = vmatpush1.msra.mxu0 0.0
    %935 = vmatprep.subr.mxu0 0.0
    %936 = vmatpush1.msra.mxu0 0.0
    %937 = vmatprep.subr.mxu0 0.0
    %938 = vmatpush1.msra.mxu0 0.0
    %939 = vmatprep.subr.mxu0 0.0
    %940 = vmatpush1.msra.mxu0 0.0
    %941 = vmatprep.subr.mxu0 0.0
    %942 = vmatpush1.msra.mxu0 0.0
    %943 = vmatprep.subr.mxu0 0.0
    %944 = vmatpush1.msra.mxu0 0.0
    %945 = vmatprep.subr.mxu0 0.0
    %946 = vmatpush1.msra.mxu0 0.0
    %947 = vmatprep.subr.mxu0 0.0
    %948 = vmatpush1.msra.mxu0 0.0
    %949 = vmatprep.subr.mxu0 0.0
    %950 = vmatpush1.msra.mxu0 0.0
    %951 = vmatprep.subr.mxu0 0.0
    %952 = vmatpush1.msra.mxu0 0.0
    %953 = vmatprep.subr.mxu0 0.0
    %954 = vmatpush1.msra.mxu0 0.0
    %955 = vmatprep.subr.mxu0 0.0
    %956 = vmatpush1.msra.mxu0 0.0
    %957 = vmatprep.subr.mxu0 0.0
    %958 = vmatpush1.msra.mxu0 0.0
    %959 = vmatprep.subr.mxu0 0.0
    %960 = vmatpush1.msra.mxu0 0.0
    %961 = vmatprep.subr.mxu0 0.0
    %962 = vmatpush1.msra.mxu0 0.0
    %963 = vmatprep.subr.mxu0 0.0
    %964 = vmatpush1.msra.mxu0 0.0
    %965 = vmatprep.subr.mxu0 0.0
    %966 = vmatpush1.msra.mxu0 0.0
    %967 = vmatprep.subr.mxu0 0.0
    %968 = vmatpush1.msra.mxu0 0.0
    %969 = vmatprep.subr.mxu0 0.0
    %970 = vmatpush1.msra.mxu0 0.0
    %971 = vmatprep.subr.mxu0 0.0
    %972 = vmatpush1.msra.mxu0 0.0
    %973 = vmatprep.subr.mxu0 0.0
    %974 = vmatpush1.msra.mxu0 0.0
    %975 = vmatprep.subr.mxu0 0.0
    %976 = vmatpush1.msra.mxu0 0.0
    %977 = vmatprep.subr.mxu0 0.0
    %978 = vmatpush1.msra.mxu0 0.0
    %979 = vmatprep.subr.mxu0 0.0
    %980 = vmatpush1.msra.mxu0 0.0
    %981 = vmatprep.subr.mxu0 0.0
    %982 = vmatpush1.msra.mxu0 0.0
    %983 = vmatprep.subr.mxu0 0.0
    %984 = vmatpush1.msra.mxu0 0.0
    %985 = vmatprep.subr.mxu0 0.0
    %986 = vmatpush1.msra.mxu0 0.0
    %987 = vmatprep.subr.mxu0 0.0
    %988 = vmatpush1.msra.mxu0 0.0
    %989 = vmatprep.mubr.f32.mxu0 0.0
    %990 = vmatmul.mubr.f32.gmra.mrb[0].mxu0 %v923
    %v991 = vpop.f32.mrb[0].mxu0
    %v992 = vadd.f32 0.0, %v991
    %v993 = vpop.f32.mrb[0].mxu0
    %994 = vdwg.mxu0
    %v995 = vadd.f32 %v374, %v992
    %v996 = vxor.u32 %v995, 2147483648
    %v997 = vmul.f32 %v996, 1.442695
    %v998 = vpow.pop %v997
    %v999 = vadd.f32 %v998, 1.0
    %v1000 = vrcp.pop %v999
    %v1001 = vmul.f32 1.0, %v1000
    %v1002 = vtanh.pop %v995
    %1004 = vrot.lane.b32.xlu0 %v919, 32
    %v1005 = vpop.permute.xlu0 %1004
    %v1007 = vmul.f32 %v1001, %v1005
    %1009 = vrot.lane.b32.xlu0 %v1002, 64
    %v1010 = vpop.permute.xlu0 %1009
    %v1012 = vmul.f32 %v1001, %v1010
    %1014 = vrot.lane.b32.xlu0 %v1012, 32
    %v1015 = vpop.permute.xlu0 %1014
    %v1017 = vadd.f32 %v1007, %v1015
    %v1018 = vtanh.pop %v1017
    %1020 = vrot.lane.b32.xlu0 %v1018, 64
    %v1021 = vpop.permute.xlu0 %1020
    %v1023 = vmul.f32 %v1001, %v1021
    %s1024 = scalar_lea.vmem %s1, 8
    %v1025 = vld [vmem:[%s1024] sm:$0x3]
    %v1026 = vsub.f32 1.0, %v1025
    %1028 = vset.pattern.permute.xlu0 0
    %1029 = vperm.xlu0 %1028, %v1025
    %v1030 = vpop.permute.xlu0 %1029
    %v1032 = vmul.f32 %v1030, %v1023
    %1034 = vset.pattern.permute.xlu0 0
    %1035 = vperm.xlu0 %1034, %v1026
    %v1036 = vpop.permute.xlu0 %1035
    %v1038 = vmul.f32 %v1036, %v911
    %1040 = vrot.lane.b32.xlu0 %v1038, 96
    %v1041 = vpop.permute.xlu0 %1040
    %v1043 = vadd.f32 %v1032, %v1041
    %v1044 = vmul.f32 %v1030, %v1017
    %v1045 = vmul.f32 %v1036, %v919
    %1047 = vrot.lane.b32.xlu0 %v1045, 32
    %v1048 = vpop.permute.xlu0 %1047
    %v1050 = vadd.f32 %v1044, %v1048
    %1052 = vrot.lane.b32.xlu0 %v1032, 32
    %v1053 = vpop.permute.xlu0 %1052
    %s1055 = scalar_lea.vmem %s9, 8
    %1056 = vst.msk [vmem:[%s1055] sm:$0x3] %vm501, %v1053
    %1058 = vrot.lane.b32.xlu0 %v1043, 32
    %v1059 = vpop.permute.xlu0 %1058
    %v1060 = vsel %vm381, %v1059, 0
    %1062 = vmatprep.subr.mxu0 0.0
    %1063 = vmatpush1.msra.mxu0 %v377
    %1064 = vmatprep.subr.mxu0 0.0
    %1065 = vmatpush1.msra.mxu0 %v378
    %1066 = vmatprep.subr.mxu0 0.0
    %1067 = vmatpush1.msra.mxu0 %v379
    %1068 = vmatprep.subr.mxu0 0.0
    %1069 = vmatpush1.msra.mxu0 %v380
    %1070 = vmatprep.subr.mxu0 0.0
    %1071 = vmatpush1.msra.mxu0 0.0
    %1072 = vmatprep.subr.mxu0 0.0
    %1073 = vmatpush1.msra.mxu0 0.0
    %1074 = vmatprep.subr.mxu0 0.0
    %1075 = vmatpush1.msra.mxu0 0.0
    %1076 = vmatprep.subr.mxu0 0.0
    %1077 = vmatpush1.msra.mxu0 0.0
    %1078 = vmatprep.subr.mxu0 0.0
    %1079 = vmatpush1.msra.mxu0 0.0
    %1080 = vmatprep.subr.mxu0 0.0
    %1081 = vmatpush1.msra.mxu0 0.0
    %1082 = vmatprep.subr.mxu0 0.0
    %1083 = vmatpush1.msra.mxu0 0.0
    %1084 = vmatprep.subr.mxu0 0.0
    %1085 = vmatpush1.msra.mxu0 0.0
    %1086 = vmatprep.subr.mxu0 0.0
    %1087 = vmatpush1.msra.mxu0 0.0
    %1088 = vmatprep.subr.mxu0 0.0
    %1089 = vmatpush1.msra.mxu0 0.0
    %1090 = vmatprep.subr.mxu0 0.0
    %1091 = vmatpush1.msra.mxu0 0.0
    %1092 = vmatprep.subr.mxu0 0.0
    %1093 = vmatpush1.msra.mxu0 0.0
    %1094 = vmatprep.subr.mxu0 0.0
    %1095 = vmatpush1.msra.mxu0 0.0
    %1096 = vmatprep.subr.mxu0 0.0
    %1097 = vmatpush1.msra.mxu0 0.0
    %1098 = vmatprep.subr.mxu0 0.0
    %1099 = vmatpush1.msra.mxu0 0.0
    %1100 = vmatprep.subr.mxu0 0.0
    %1101 = vmatpush1.msra.mxu0 0.0
    %1102 = vmatprep.subr.mxu0 0.0
    %1103 = vmatpush1.msra.mxu0 0.0
    %1104 = vmatprep.subr.mxu0 0.0
    %1105 = vmatpush1.msra.mxu0 0.0
    %1106 = vmatprep.subr.mxu0 0.0
    %1107 = vmatpush1.msra.mxu0 0.0
    %1108 = vmatprep.subr.mxu0 0.0
    %1109 = vmatpush1.msra.mxu0 0.0
    %1110 = vmatprep.subr.mxu0 0.0
    %1111 = vmatpush1.msra.mxu0 0.0
    %1112 = vmatprep.subr.mxu0 0.0
    %1113 = vmatpush1.msra.mxu0 0.0
    %1114 = vmatprep.subr.mxu0 0.0
    %1115 = vmatpush1.msra.mxu0 0.0
    %1116 = vmatprep.subr.mxu0 0.0
    %1117 = vmatpush1.msra.mxu0 0.0
    %1118 = vmatprep.subr.mxu0 0.0
    %1119 = vmatpush1.msra.mxu0 0.0
    %1120 = vmatprep.subr.mxu0 0.0
    %1121 = vmatpush1.msra.mxu0 0.0
    %1122 = vmatprep.subr.mxu0 0.0
    %1123 = vmatpush1.msra.mxu0 0.0
    %1124 = vmatprep.subr.mxu0 0.0
    %1125 = vmatpush1.msra.mxu0 0.0
    %1126 = vmatprep.mubr.f32.mxu0 0.0
    %1127 = vmatmul.mubr.f32.gmra.mrb[0].mxu0 %v1060
    %v1128 = vpop.f32.mrb[0].mxu0
    %v1129 = vadd.f32 0.0, %v1128
    %v1130 = vpop.f32.mrb[0].mxu0
    %1131 = vdwg.mxu0
    %v1133 = vrot.slane %v1129, 6
    %v1135 = vadd.f32 %v374, %v1133
    %v1136 = vxor.u32 %v1135, 2147483648
    %v1137 = vmul.f32 %v1136, 1.442695
    %v1138 = vpow.pop %v1137
    %v1139 = vadd.f32 %v1138, 1.0
    %v1140 = vrcp.pop %v1139
    %v1141 = vmul.f32 1.0, %v1140
    %v1142 = vtanh.pop %v1135
    %v1144 = vrot.slane %v1050, 6
    %v1146 = vmul.f32 %v1141, %v1144
    %1148 = vrot.lane.b32.xlu0 %v1142, 64
    %v1149 = vpop.permute.xlu0 %1148
    %v1151 = vmul.f32 %v1141, %v1149
    %1153 = vrot.lane.b32.xlu0 %v1151, 32
    %v1154 = vpop.permute.xlu0 %1153
    %v1156 = vadd.f32 %v1146, %v1154
    %v1157 = vtanh.pop %v1156
    %1159 = vrot.lane.b32.xlu0 %v1157, 64
    %v1160 = vpop.permute.xlu0 %1159
    %v1162 = vmul.f32 %v1141, %v1160
    %s1163 = scalar_lea.vmem %s1, 10
    %v1164 = vld [vmem:[%s1163] sm:$0x3]
    %v1165 = vsub.f32 1.0, %v1164
    %1167 = vset.pattern.permute.xlu0 0
    %1168 = vperm.xlu0 %1167, %v1164
    %v1169 = vpop.permute.xlu0 %1168
    %v1172 = vrot.slane %v1162, 2
    %1173 = vrot.lane.b32.xlu0 %v1172, 32
    %v1174 = vpop.permute.xlu0 %1173
    %v1176 = vmul.f32 %v1169, %v1174
    %1178 = vset.pattern.permute.xlu0 0
    %1179 = vperm.xlu0 %1178, %v1165
    %v1180 = vpop.permute.xlu0 %1179
    %v1182 = vmul.f32 %v1180, %v1043
    %1184 = vrot.lane.b32.xlu0 %v1182, 32
    %v1185 = vpop.permute.xlu0 %1184
    %v1187 = vadd.f32 %v1176, %v1185
    %v1189 = vrot.slane %v1156, 2
    %1190 = vrot.lane.b32.xlu0 %v1189, 96
    %v1191 = vpop.permute.xlu0 %1190
    %v1193 = vmul.f32 %v1169, %v1191
    %v1194 = vmul.f32 %v1180, %v1050
    %1196 = vrot.lane.b32.xlu0 %v1194, 96
    %v1197 = vpop.permute.xlu0 %1196
    %v1199 = vadd.f32 %v1193, %v1197
    %s1200 = scalar_lea.vmem %s9, 10
    %1201 = vst.msk [vmem:[%s1200] sm:$0x3] %vm501, %v1176
    %v1203 = vsel %vm381, %v1187, 0
    %1205 = vmatprep.subr.mxu0 0.0
    %1206 = vmatpush1.msra.mxu0 %v377
    %1207 = vmatprep.subr.mxu0 0.0
    %1208 = vmatpush1.msra.mxu0 %v378
    %1209 = vmatprep.subr.mxu0 0.0
    %1210 = vmatpush1.msra.mxu0 %v379
    %1211 = vmatprep.subr.mxu0 0.0
    %1212 = vmatpush1.msra.mxu0 %v380
    %1213 = vmatprep.subr.mxu0 0.0
    %1214 = vmatpush1.msra.mxu0 0.0
    %1215 = vmatprep.subr.mxu0 0.0
    %1216 = vmatpush1.msra.mxu0 0.0
    %1217 = vmatprep.subr.mxu0 0.0
    %1218 = vmatpush1.msra.mxu0 0.0
    %1219 = vmatprep.subr.mxu0 0.0
    %1220 = vmatpush1.msra.mxu0 0.0
    %1221 = vmatprep.subr.mxu0 0.0
    %1222 = vmatpush1.msra.mxu0 0.0
    %1223 = vmatprep.subr.mxu0 0.0
    %1224 = vmatpush1.msra.mxu0 0.0
    %1225 = vmatprep.subr.mxu0 0.0
    %1226 = vmatpush1.msra.mxu0 0.0
    %1227 = vmatprep.subr.mxu0 0.0
    %1228 = vmatpush1.msra.mxu0 0.0
    %1229 = vmatprep.subr.mxu0 0.0
    %1230 = vmatpush1.msra.mxu0 0.0
    %1231 = vmatprep.subr.mxu0 0.0
    %1232 = vmatpush1.msra.mxu0 0.0
    %1233 = vmatprep.subr.mxu0 0.0
    %1234 = vmatpush1.msra.mxu0 0.0
    %1235 = vmatprep.subr.mxu0 0.0
    %1236 = vmatpush1.msra.mxu0 0.0
    %1237 = vmatprep.subr.mxu0 0.0
    %1238 = vmatpush1.msra.mxu0 0.0
    %1239 = vmatprep.subr.mxu0 0.0
    %1240 = vmatpush1.msra.mxu0 0.0
    %1241 = vmatprep.subr.mxu0 0.0
    %1242 = vmatpush1.msra.mxu0 0.0
    %1243 = vmatprep.subr.mxu0 0.0
    %1244 = vmatpush1.msra.mxu0 0.0
    %1245 = vmatprep.subr.mxu0 0.0
    %1246 = vmatpush1.msra.mxu0 0.0
    %1247 = vmatprep.subr.mxu0 0.0
    %1248 = vmatpush1.msra.mxu0 0.0
    %1249 = vmatprep.subr.mxu0 0.0
    %1250 = vmatpush1.msra.mxu0 0.0
    %1251 = vmatprep.subr.mxu0 0.0
    %1252 = vmatpush1.msra.mxu0 0.0
    %1253 = vmatprep.subr.mxu0 0.0
    %1254 = vmatpush1.msra.mxu0 0.0
    %1255 = vmatprep.subr.mxu0 0.0
    %1256 = vmatpush1.msra.mxu0 0.0
    %1257 = vmatprep.subr.mxu0 0.0
    %1258 = vmatpush1.msra.mxu0 0.0
    %1259 = vmatprep.subr.mxu0 0.0
    %1260 = vmatpush1.msra.mxu0 0.0
    %1261 = vmatprep.subr.mxu0 0.0
    %1262 = vmatpush1.msra.mxu0 0.0
    %1263 = vmatprep.subr.mxu0 0.0
    %1264 = vmatpush1.msra.mxu0 0.0
    %1265 = vmatprep.subr.mxu0 0.0
    %1266 = vmatpush1.msra.mxu0 0.0
    %1267 = vmatprep.subr.mxu0 0.0
    %1268 = vmatpush1.msra.mxu0 0.0
    %1269 = vmatprep.mubr.f32.mxu0 0.0
    %1270 = vmatmul.mubr.f32.gmra.mrb[0].mxu0 %v1203
    %v1271 = vpop.f32.mrb[0].mxu0
    %v1272 = vadd.f32 0.0, %v1271
    %v1273 = vpop.f32.mrb[0].mxu0
    %1274 = vdwg.mxu0
    %v1276 = vrot.slane %v1272, 4
    %v1278 = vadd.f32 %v374, %v1276
    %v1279 = vxor.u32 %v1278, 2147483648
    %v1280 = vmul.f32 %v1279, 1.442695
    %v1281 = vpow.pop %v1280
    %v1282 = vadd.f32 %v1281, 1.0
    %v1283 = vrcp.pop %v1282
    %v1284 = vmul.f32 1.0, %v1283
    %v1285 = vtanh.pop %v1278
    %v1287 = vrot.slane %v1199, 4
    %1288 = vrot.lane.b32.xlu0 %v1287, 32
    %v1289 = vpop.permute.xlu0 %1288
    %v1291 = vmul.f32 %v1284, %v1289
    %1293 = vrot.lane.b32.xlu0 %v1285, 64
    %v1294 = vpop.permute.xlu0 %1293
    %v1296 = vmul.f32 %v1284, %v1294
    %1298 = vrot.lane.b32.xlu0 %v1296, 32
    %v1299 = vpop.permute.xlu0 %1298
    %v1301 = vadd.f32 %v1291, %v1299
    %v1302 = vtanh.pop %v1301
    %1304 = vrot.lane.b32.xlu0 %v1302, 64
    %v1305 = vpop.permute.xlu0 %1304
    %v1307 = vmul.f32 %v1284, %v1305
    %s1308 = scalar_lea.vmem %s1, 12
    %v1309 = vld [vmem:[%s1308] sm:$0x3]
    %v1310 = vsub.f32 1.0, %v1309
    %1312 = vset.pattern.permute.xlu0 0
    %1313 = vperm.xlu0 %1312, %v1309
    %v1314 = vpop.permute.xlu0 %1313
    %v1317 = vrot.slane %v1307, 4
    %1318 = vrot.lane.b32.xlu0 %v1317, 32
    %v1319 = vpop.permute.xlu0 %1318
    %v1321 = vmul.f32 %v1314, %v1319
    %1323 = vset.pattern.permute.xlu0 0
    %1324 = vperm.xlu0 %1323, %v1310
    %v1325 = vpop.permute.xlu0 %1324
    %v1327 = vmul.f32 %v1325, %v1187
    %v1328 = vadd.f32 %v1321, %v1327
    %v1330 = vrot.slane %v1301, 4
    %1331 = vrot.lane.b32.xlu0 %v1330, 96
    %v1332 = vpop.permute.xlu0 %1331
    %v1334 = vmul.f32 %v1314, %v1332
    %v1335 = vmul.f32 %v1325, %v1199
    %v1336 = vadd.f32 %v1334, %v1335
    %s1337 = scalar_lea.vmem %s9, 12
    %1338 = vst.msk [vmem:[%s1337] sm:$0x3] %vm501, %v1321
    %v1340 = vsel %vm381, %v1328, 0
    %1342 = vmatprep.subr.mxu0 0.0
    %1343 = vmatpush1.msra.mxu0 %v377
    %1344 = vmatprep.subr.mxu0 0.0
    %1345 = vmatpush1.msra.mxu0 %v378
    %1346 = vmatprep.subr.mxu0 0.0
    %1347 = vmatpush1.msra.mxu0 %v379
    %1348 = vmatprep.subr.mxu0 0.0
    %1349 = vmatpush1.msra.mxu0 %v380
    %1350 = vmatprep.subr.mxu0 0.0
    %1351 = vmatpush1.msra.mxu0 0.0
    %1352 = vmatprep.subr.mxu0 0.0
    %1353 = vmatpush1.msra.mxu0 0.0
    %1354 = vmatprep.subr.mxu0 0.0
    %1355 = vmatpush1.msra.mxu0 0.0
    %1356 = vmatprep.subr.mxu0 0.0
    %1357 = vmatpush1.msra.mxu0 0.0
    %1358 = vmatprep.subr.mxu0 0.0
    %1359 = vmatpush1.msra.mxu0 0.0
    %1360 = vmatprep.subr.mxu0 0.0
    %1361 = vmatpush1.msra.mxu0 0.0
    %1362 = vmatprep.subr.mxu0 0.0
    %1363 = vmatpush1.msra.mxu0 0.0
    %1364 = vmatprep.subr.mxu0 0.0
    %1365 = vmatpush1.msra.mxu0 0.0
    %1366 = vmatprep.subr.mxu0 0.0
    %1367 = vmatpush1.msra.mxu0 0.0
    %1368 = vmatprep.subr.mxu0 0.0
    %1369 = vmatpush1.msra.mxu0 0.0
    %1370 = vmatprep.subr.mxu0 0.0
    %1371 = vmatpush1.msra.mxu0 0.0
    %1372 = vmatprep.subr.mxu0 0.0
    %1373 = vmatpush1.msra.mxu0 0.0
    %1374 = vmatprep.subr.mxu0 0.0
    %1375 = vmatpush1.msra.mxu0 0.0
    %1376 = vmatprep.subr.mxu0 0.0
    %1377 = vmatpush1.msra.mxu0 0.0
    %1378 = vmatprep.subr.mxu0 0.0
    %1379 = vmatpush1.msra.mxu0 0.0
    %1380 = vmatprep.subr.mxu0 0.0
    %1381 = vmatpush1.msra.mxu0 0.0
    %1382 = vmatprep.subr.mxu0 0.0
    %1383 = vmatpush1.msra.mxu0 0.0
    %1384 = vmatprep.subr.mxu0 0.0
    %1385 = vmatpush1.msra.mxu0 0.0
    %1386 = vmatprep.subr.mxu0 0.0
    %1387 = vmatpush1.msra.mxu0 0.0
    %1388 = vmatprep.subr.mxu0 0.0
    %1389 = vmatpush1.msra.mxu0 0.0
    %1390 = vmatprep.subr.mxu0 0.0
    %1391 = vmatpush1.msra.mxu0 0.0
    %1392 = vmatprep.subr.mxu0 0.0
    %1393 = vmatpush1.msra.mxu0 0.0
    %1394 = vmatprep.subr.mxu0 0.0
    %1395 = vmatpush1.msra.mxu0 0.0
    %1396 = vmatprep.subr.mxu0 0.0
    %1397 = vmatpush1.msra.mxu0 0.0
    %1398 = vmatprep.subr.mxu0 0.0
    %1399 = vmatpush1.msra.mxu0 0.0
    %1400 = vmatprep.subr.mxu0 0.0
    %1401 = vmatpush1.msra.mxu0 0.0
    %1402 = vmatprep.subr.mxu0 0.0
    %1403 = vmatpush1.msra.mxu0 0.0
    %1404 = vmatprep.subr.mxu0 0.0
    %1405 = vmatpush1.msra.mxu0 0.0
    %1406 = vmatprep.mubr.f32.mxu0 0.0
    %1407 = vmatmul.mubr.f32.gmra.mrb[0].mxu0 %v1340
    %v1408 = vpop.f32.mrb[0].mxu0
    %v1409 = vadd.f32 0.0, %v1408
    %v1410 = vpop.f32.mrb[0].mxu0
    %1411 = vdwg.mxu0
    %v1413 = vrot.slane %v1409, 2
    %v1415 = vadd.f32 %v374, %v1413
    %v1416 = vxor.u32 %v1415, 2147483648
    %v1417 = vmul.f32 %v1416, 1.442695
    %v1418 = vpow.pop %v1417
    %v1419 = vadd.f32 %v1418, 1.0
    %v1420 = vrcp.pop %v1419
    %v1421 = vmul.f32 1.0, %v1420
    %v1422 = vtanh.pop %v1415
    %v1424 = vrot.slane %v1336, 2
    %1425 = vrot.lane.b32.xlu0 %v1424, 32
    %v1426 = vpop.permute.xlu0 %1425
    %v1428 = vmul.f32 %v1421, %v1426
    %1430 = vrot.lane.b32.xlu0 %v1422, 64
    %v1431 = vpop.permute.xlu0 %1430
    %v1433 = vmul.f32 %v1421, %v1431
    %1435 = vrot.lane.b32.xlu0 %v1433, 32
    %v1436 = vpop.permute.xlu0 %1435
    %v1438 = vadd.f32 %v1428, %v1436
    %v1439 = vtanh.pop %v1438
    %1441 = vrot.lane.b32.xlu0 %v1439, 64
    %v1442 = vpop.permute.xlu0 %1441
    %v1444 = vmul.f32 %v1421, %v1442
    %s1445 = scalar_lea.vmem %s1, 14
    %v1446 = vld [vmem:[%s1445] sm:$0x3]
    %v1447 = vsub.f32 1.0, %v1446
    %1449 = vset.pattern.permute.xlu0 0
    %1450 = vperm.xlu0 %1449, %v1446
    %v1451 = vpop.permute.xlu0 %1450
    %v1454 = vrot.slane %v1444, 6
    %1455 = vrot.lane.b32.xlu0 %v1454, 32
    %v1456 = vpop.permute.xlu0 %1455
    %v1458 = vmul.f32 %v1451, %v1456
    %1460 = vset.pattern.permute.xlu0 0
    %1461 = vperm.xlu0 %1460, %v1447
    %v1462 = vpop.permute.xlu0 %1461
    %v1464 = vmul.f32 %v1462, %v1328
    %v1465 = vadd.f32 %v1458, %v1464
    %v1467 = vrot.slane %v1438, 6
    %1468 = vrot.lane.b32.xlu0 %v1467, 96
    %v1469 = vpop.permute.xlu0 %1468
    %v1471 = vmul.f32 %v1451, %v1469
    %v1472 = vmul.f32 %v1462, %v1336
    %v1473 = vadd.f32 %v1471, %v1472
    %s1474 = scalar_lea.vmem %s9, 14
    %1475 = vst.msk [vmem:[%s1474] sm:$0x3] %vm501, %v1458
    %v1476 = vld [vmem:[%s5] sm:$0xff]
    %v1477 = vld [vmem:[%s5 + $0x8] sm:$0xff]
    %v1478 = vld [vmem:[%s5 + $0x10] sm:$0xff]
    %v1479 = vld [vmem:[%s5 + $0x18] sm:$0xff]
    %v1480 = vld [vmem:[%s6] sm:$0x1]
    %v1482 = vlaneseq
    %v1483 = vshrl.u32 %v1482, 7
    %v1484 = vsub.s32 0, %v1483
    %v1485 = vrot.slane %v1480, %v1484
    %v1488 = vsel %vm381, %v1465, 0
    %1490 = vmatprep.subr.mxu0 0.0
    %1491 = vmatpush1.msra.mxu0 %v1476
    %1492 = vmatprep.subr.mxu0 0.0
    %1493 = vmatpush1.msra.mxu0 %v1477
    %1494 = vmatprep.subr.mxu0 0.0
    %1495 = vmatpush1.msra.mxu0 %v1478
    %1496 = vmatprep.subr.mxu0 0.0
    %1497 = vmatpush1.msra.mxu0 %v1479
    %1498 = vmatprep.subr.mxu0 0.0
    %1499 = vmatpush1.msra.mxu0 0.0
    %1500 = vmatprep.subr.mxu0 0.0
    %1501 = vmatpush1.msra.mxu0 0.0
    %1502 = vmatprep.subr.mxu0 0.0
    %1503 = vmatpush1.msra.mxu0 0.0
    %1504 = vmatprep.subr.mxu0 0.0
    %1505 = vmatpush1.msra.mxu0 0.0
    %1506 = vmatprep.subr.mxu0 0.0
    %1507 = vmatpush1.msra.mxu0 0.0
    %1508 = vmatprep.subr.mxu0 0.0
    %1509 = vmatpush1.msra.mxu0 0.0
    %1510 = vmatprep.subr.mxu0 0.0
    %1511 = vmatpush1.msra.mxu0 0.0
    %1512 = vmatprep.subr.mxu0 0.0
    %1513 = vmatpush1.msra.mxu0 0.0
    %1514 = vmatprep.subr.mxu0 0.0
    %1515 = vmatpush1.msra.mxu0 0.0
    %1516 = vmatprep.subr.mxu0 0.0
    %1517 = vmatpush1.msra.mxu0 0.0
    %1518 = vmatprep.subr.mxu0 0.0
    %1519 = vmatpush1.msra.mxu0 0.0
    %1520 = vmatprep.subr.mxu0 0.0
    %1521 = vmatpush1.msra.mxu0 0.0
    %1522 = vmatprep.subr.mxu0 0.0
    %1523 = vmatpush1.msra.mxu0 0.0
    %1524 = vmatprep.subr.mxu0 0.0
    %1525 = vmatpush1.msra.mxu0 0.0
    %1526 = vmatprep.subr.mxu0 0.0
    %1527 = vmatpush1.msra.mxu0 0.0
    %1528 = vmatprep.subr.mxu0 0.0
    %1529 = vmatpush1.msra.mxu0 0.0
    %1530 = vmatprep.subr.mxu0 0.0
    %1531 = vmatpush1.msra.mxu0 0.0
    %1532 = vmatprep.subr.mxu0 0.0
    %1533 = vmatpush1.msra.mxu0 0.0
    %1534 = vmatprep.subr.mxu0 0.0
    %1535 = vmatpush1.msra.mxu0 0.0
    %1536 = vmatprep.subr.mxu0 0.0
    %1537 = vmatpush1.msra.mxu0 0.0
    %1538 = vmatprep.subr.mxu0 0.0
    %1539 = vmatpush1.msra.mxu0 0.0
    %1540 = vmatprep.subr.mxu0 0.0
    %1541 = vmatpush1.msra.mxu0 0.0
    %1542 = vmatprep.subr.mxu0 0.0
    %1543 = vmatpush1.msra.mxu0 0.0
    %1544 = vmatprep.subr.mxu0 0.0
    %1545 = vmatpush1.msra.mxu0 0.0
    %1546 = vmatprep.subr.mxu0 0.0
    %1547 = vmatpush1.msra.mxu0 0.0
    %1548 = vmatprep.subr.mxu0 0.0
    %1549 = vmatpush1.msra.mxu0 0.0
    %1550 = vmatprep.subr.mxu0 0.0
    %1551 = vmatpush1.msra.mxu0 0.0
    %1552 = vmatprep.subr.mxu0 0.0
    %1553 = vmatpush1.msra.mxu0 0.0
    %1554 = vmatprep.mubr.f32.mxu0 0.0
    %1555 = vmatmul.mubr.f32.gmra.mrb[0].mxu0 %v1488
    %v1556 = vpop.f32.mrb[0].mxu0
    %v1557 = vadd.f32 %v1485, %v1556
    %v1558 = vpop.f32.mrb[0].mxu0
    %1559 = vdwg.mxu0
    %v1560 = vtanh.pop %v1557
    %vm1561 = vcmask 517120
    %1562 = vst.msk [vmem:[#allocation2] sm:$0x3] %vm1561, %v1560
    %v1563 = vld [vmem:[%s7] sm:$0xff]
    %v1564 = vld [vmem:[%s7 + $0x8] sm:$0xff]
    %v1565 = vld [vmem:[%s7 + $0x10] sm:$0xff]
    %v1566 = vld [vmem:[%s7 + $0x18] sm:$0xff]
    %v1567 = vld [vmem:[%s8] sm:$0x1]
    %v1569 = vlaneseq
    %v1570 = vshrl.u32 %v1569, 7
    %v1571 = vsub.s32 0, %v1570
    %v1572 = vrot.slane %v1567, %v1571
    %v1575 = vsel %vm381, %v1473, 0
    %1577 = vmatprep.subr.mxu0 0.0
    %1578 = vmatpush1.msra.mxu0 %v1563
    %1579 = vmatprep.subr.mxu0 0.0
    %1580 = vmatpush1.msra.mxu0 %v1564
    %1581 = vmatprep.subr.mxu0 0.0
    %1582 = vmatpush1.msra.mxu0 %v1565
    %1583 = vmatprep.subr.mxu0 0.0
    %1584 = vmatpush1.msra.mxu0 %v1566
    %1585 = vmatprep.subr.mxu0 0.0
    %1586 = vmatpush1.msra.mxu0 0.0
    %1587 = vmatprep.subr.mxu0 0.0
    %1588 = vmatpush1.msra.mxu0 0.0
    %1589 = vmatprep.subr.mxu0 0.0
    %1590 = vmatpush1.msra.mxu0 0.0
    %1591 = vmatprep.subr.mxu0 0.0
    %1592 = vmatpush1.msra.mxu0 0.0
    %1593 = vmatprep.subr.mxu0 0.0
    %1594 = vmatpush1.msra.mxu0 0.0
    %1595 = vmatprep.subr.mxu0 0.0
    %1596 = vmatpush1.msra.mxu0 0.0
    %1597 = vmatprep.subr.mxu0 0.0
    %1598 = vmatpush1.msra.mxu0 0.0
    %1599 = vmatprep.subr.mxu0 0.0
    %1600 = vmatpush1.msra.mxu0 0.0
    %1601 = vmatprep.subr.mxu0 0.0
    %1602 = vmatpush1.msra.mxu0 0.0
    %1603 = vmatprep.subr.mxu0 0.0
    %1604 = vmatpush1.msra.mxu0 0.0
    %1605 = vmatprep.subr.mxu0 0.0
    %1606 = vmatpush1.msra.mxu0 0.0
    %1607 = vmatprep.subr.mxu0 0.0
    %1608 = vmatpush1.msra.mxu0 0.0
    %1609 = vmatprep.subr.mxu0 0.0
    %1610 = vmatpush1.msra.mxu0 0.0
    %1611 = vmatprep.subr.mxu0 0.0
    %1612 = vmatpush1.msra.mxu0 0.0
    %1613 = vmatprep.subr.mxu0 0.0
    %1614 = vmatpush1.msra.mxu0 0.0
    %1615 = vmatprep.subr.mxu0 0.0
    %1616 = vmatpush1.msra.mxu0 0.0
    %1617 = vmatprep.subr.mxu0 0.0
    %1618 = vmatpush1.msra.mxu0 0.0
    %1619 = vmatprep.subr.mxu0 0.0
    %1620 = vmatpush1.msra.mxu0 0.0
    %1621 = vmatprep.subr.mxu0 0.0
    %1622 = vmatpush1.msra.mxu0 0.0
    %1623 = vmatprep.subr.mxu0 0.0
    %1624 = vmatpush1.msra.mxu0 0.0
    %1625 = vmatprep.subr.mxu0 0.0
    %1626 = vmatpush1.msra.mxu0 0.0
    %1627 = vmatprep.subr.mxu0 0.0
    %1628 = vmatpush1.msra.mxu0 0.0
    %1629 = vmatprep.subr.mxu0 0.0
    %1630 = vmatpush1.msra.mxu0 0.0
    %1631 = vmatprep.subr.mxu0 0.0
    %1632 = vmatpush1.msra.mxu0 0.0
    %1633 = vmatprep.subr.mxu0 0.0
    %1634 = vmatpush1.msra.mxu0 0.0
    %1635 = vmatprep.subr.mxu0 0.0
    %1636 = vmatpush1.msra.mxu0 0.0
    %1637 = vmatprep.subr.mxu0 0.0
    %1638 = vmatpush1.msra.mxu0 0.0
    %1639 = vmatprep.subr.mxu0 0.0
    %1640 = vmatpush1.msra.mxu0 0.0
    %1641 = vmatprep.mubr.f32.mxu0 0.0
    %1642 = vmatmul.mubr.f32.gmra.mrb[0].mxu0 %v1575
    %v1643 = vpop.f32.mrb[0].mxu0
    %v1644 = vadd.f32 %v1572, %v1643
    %v1645 = vpop.f32.mrb[0].mxu0
    %1646 = vdwg.mxu0
    %1647 = vst.msk [vmem:[#allocation4] sm:$0x3] %vm1561, %v1644
    // Predicated region
    $region38: #{oscar_encoder_forward.1} parent=1 // pred_check
      _
    $region39: #{oscar_encoder_forward.1} parent=1 // pred_check_branch
      %1649 = sbr.rel (0) target = $region41
    $region40: #{oscar_encoder_forward.1} parent=1 // pred_region
      _
    $region41: #{oscar_encoder_forward.1} parent=1 // pred_fallthru
      _
    // Predicated region
    $region42: #{oscar_encoder_forward.1} parent=1 // pred_check
      _
    $region43: #{oscar_encoder_forward.1} parent=1 // pred_check_branch
      %1651 = sbr.rel (0) target = $region45
    $region44: #{oscar_encoder_forward.1} parent=1 // pred_region
      %s1653 = ssub.s32 32, 32
      %1654 = vsyncadd [#allocation3], %s1653
      %s1656 = sshll.u32 [#allocation2], 4
      %s1657 = int_to_ptr.vmem [resolvable:$true] %s1656
      %1659 = dma.vmem_to_hbm [thread:$0]  %s1657, 32, %s10, [#allocation3]
    $region45: #{oscar_encoder_forward.1} parent=1 // pred_fallthru
      _
    // Predicated region
    $region46: #{oscar_encoder_forward.1} parent=1 // pred_check
      _
    $region47: #{oscar_encoder_forward.1} parent=1 // pred_check_branch
      %1661 = sbr.rel (0) target = $region49
    $region48: #{oscar_encoder_forward.1} parent=1 // pred_region
      %s1663 = ssub.s32 32, 32
      %1664 = vsyncadd [#allocation5], %s1663
      %s1666 = sshll.u32 [#allocation4], 4
      %s1667 = int_to_ptr.vmem [resolvable:$true] %s1666
      %1669 = dma.vmem_to_hbm [thread:$0]  %s1667, 32, %s11, [#allocation5]
    $region49: #{oscar_encoder_forward.1} parent=1 // pred_fallthru
      _
    // Predicated region
    $region50: #{oscar_encoder_forward.1} parent=1 // pred_check
      _
    $region51: #{oscar_encoder_forward.1} parent=1 // pred_check_branch
      %1671 = sbr.rel (0) target = $region53
    $region52: #{oscar_encoder_forward.1} parent=1 // pred_region
      _
    $region53: #{oscar_encoder_forward.1} parent=1 // pred_fallthru
      _
    // Predicated region
    $region54: #{oscar_encoder_forward.1} parent=1 // pred_check
      _
    $region55: #{oscar_encoder_forward.1} parent=1 // pred_check_branch
      %1673 = sbr.rel (0) target = $region57
    $region56: #{oscar_encoder_forward.1} parent=1 // pred_region
      %1674 = dma.done [#allocation3], 32
    $region57: #{oscar_encoder_forward.1} parent=1 // pred_fallthru
      _
    // Predicated region
    $region58: #{oscar_encoder_forward.1} parent=1 // pred_check
      _
    $region59: #{oscar_encoder_forward.1} parent=1 // pred_check_branch
      %1676 = sbr.rel (0) target = $region61
    $region60: #{oscar_encoder_forward.1} parent=1 // pred_region
      %1677 = dma.done [#allocation5], 32
    $region61: #{oscar_encoder_forward.1} parent=1 // pred_fallthru
      _
    %1678 = vsyncpa [#allocation3], 1
    %1679 = vsyncpa [#allocation5], 1

</llo_original>
